<compile_context>
chip_gen: v7x
topology: tpu7x:2x2x1
jax: 0.10.0
libtpu: 0.0.40
codegen_flags: <defaults>
</compile_context>

<pallas_src>
from functools import partial

import jax
import jax.numpy as jnp
from jax import lax
from jax.experimental import pallas as pl
from jax.experimental.pallas import tpu as pltpu


# ----------------------------------------------------------------------------- kernel
def bilstm_kernel(emb_ref, lens_ref, wx_ref, whh_ref, b_ref, wout_ref, bout_ref,
                  out_ref, gx_ref):
    # emb_ref : [T*B, 2E]  time-major rows (t*B + b); cols = [fwd emb | reversed emb]
    # lens_ref: [B, 1]     int32 valid sequence lengths
    # wx_ref  : [2E, 8H]   block-diagonal input->gates (both dirs), gate-major cols
    # whh_ref : [2H, 8H]   block-diagonal hidden->gates (both dirs)
    # b_ref   : [1, 8H]    combined b_ih + b_hh for both directions
    # wout_ref: [2H, CP]   classifier weight zero-padded to CP(=128) lanes
    # bout_ref: [1, CP]
    # out_ref : [B, CP]    lane-dense logits slab
    # gx_ref  : [T*B, 8H]  VMEM scratch holding the precomputed input projections
    TB = emb_ref.shape[0]
    B = out_ref.shape[0]
    T = TB // B
    H2 = whh_ref.shape[0]          # 2H  (fwd|bwd stacked hidden width)
    H = H2 // 2

    # ---- one bulk MXU matmul for every timestep & direction (bias folded in) ----
    gx_ref[...] = (jnp.dot(emb_ref[...], wx_ref[...],
                           preferred_element_type=jnp.float32) + b_ref[...])

    whh = whh_ref[...]

    # ---- loop-invariant mask material (hoisted: broadcasts are not CSE'd) ----
    lens_b = jnp.broadcast_to(lens_ref[...], (B, H2))                  # [B, 2H] int32
    fwd_half = lax.broadcasted_iota(jnp.int32, (B, H2), 1) < H         # [B, 2H] bool

    h = jnp.zeros((B, H2), jnp.float32)
    c = jnp.zeros((B, H2), jnp.float32)

    # Fully unrolled time loop (T static): the fwd half consumes timestep k and the
    # bwd half consumes timestep T-1-k (the stacked emb/gx rows were built that
    # way), so both directions advance in lock-step with ONE matmul per step.
    for k in range(T):
        gates = gx_ref[k * B:(k + 1) * B, :] + jnp.dot(
            h, whh, preferred_element_type=jnp.float32)                # [B, 8H]
        sig = jax.nn.sigmoid(gates)            # full-width EUP pass (i, f, o reused)
        i_g = sig[:, 0 * H2:1 * H2]
        f_g = sig[:, 1 * H2:2 * H2]
        g_g = jnp.tanh(gates[:, 2 * H2:3 * H2])
        o_g = sig[:, 3 * H2:4 * H2]
        c_new = f_g * c + i_g * g_g
        h_new = o_g * jnp.tanh(c_new)
        # pack_padded_sequence: freeze (h, c) once past each row's valid length.
        t_eff = jnp.where(fwd_half, k, T - 1 - k)                      # const per step
        valid = t_eff < lens_b
        h = jnp.where(valid, h_new, h)
        c = jnp.where(valid, c_new, c)

    # `h` already IS cat(hidden[-2], hidden[-1]) == [h_fwd | h_bwd]; lane-dense logits.
    out_ref[...] = (jnp.dot(h, wout_ref[...], preferred_element_type=jnp.float32)
                    + bout_ref[...])


# ----------------------------------------------------------------------------- params
def init_torch_params(key, num_emb, emb_dim, num_classes):
    """Deterministic synthetic parameters with PyTorch nn.LSTM / nn.Linear shapes."""
    H = emb_dim
    ks = jax.random.split(key, 12)
    scale = 1.0 / jnp.sqrt(jnp.float32(H))

    def u(k, shape):
        return jax.random.uniform(k, shape, jnp.float32, -scale, scale)

    return {
        "embedding": jax.random.normal(ks[0], (num_emb, emb_dim), jnp.float32),
        "wih_f": u(ks[1], (4 * H, emb_dim)), "whh_f": u(ks[2], (4 * H, H)),
        "bih_f": u(ks[3], (4 * H,)),         "bhh_f": u(ks[4], (4 * H,)),
        "wih_b": u(ks[5], (4 * H, emb_dim)), "whh_b": u(ks[6], (4 * H, H)),
        "bih_b": u(ks[7], (4 * H,)),         "bhh_b": u(ks[8], (4 * H,)),
        "w_lin": u(ks[9], (num_classes, 2 * H)), "b_lin": u(ks[10], (num_classes,)),
    }


def pack_params(tp):
    """Repack PyTorch-shaped params into the fused block-diagonal kernel layout."""
    H = tp["whh_f"].shape[1]
    C = tp["w_lin"].shape[0]

    def place_cols(w4h, direction):
        # w4h: [R, 4H] in PyTorch gate order (i, f, g, o) along columns.
        # Destination layout is gate-major, 2H per gate: fwd half then bwd half.
        R = w4h.shape[0]
        out = jnp.zeros((R, 8 * H), jnp.float32)
        for g in range(4):
            c0 = g * 2 * H + direction * H
            out = out.at[:, c0:c0 + H].set(w4h[:, g * H:(g + 1) * H])
        return out

    wx = jnp.concatenate([place_cols(tp["wih_f"].T, 0),
                          place_cols(tp["wih_b"].T, 1)], axis=0)        # [2E, 8H]
    whh = jnp.concatenate([place_cols(tp["whh_f"].T, 0),
                           place_cols(tp["whh_b"].T, 1)], axis=0)       # [2H, 8H]
    b8 = (place_cols((tp["bih_f"] + tp["bhh_f"])[None, :], 0)
          + place_cols((tp["bih_b"] + tp["bhh_b"])[None, :], 1))        # [1, 8H]

    # Lane-dense classifier: pad the C output columns up to a multiple of 128 lanes.
    CP = ((C + 127) // 128) * 128
    wout = jnp.zeros((2 * H, CP), jnp.float32).at[:, :C].set(tp["w_lin"].T)
    bout = jnp.zeros((1, CP), jnp.float32).at[:, :C].set(tp["b_lin"][None, :])

    return {"embedding": tp["embedding"], "wx": wx, "whh": whh, "b": b8,
            "w_out": wout, "b_out": bout}


# ----------------------------------------------------------------------------- wrapper
@partial(jax.jit, static_argnames=("pad_idx", "num_classes"))
def bilstm_forward(x_tokens, params, *, pad_idx, num_classes):
    emb_table = params["embedding"]                   # [V, E]
    B, T = x_tokens.shape
    E = emb_table.shape[1]
    H = E
    CP = params["w_out"].shape[1]

    # TODO(synk): the embedding gather stays as a single XLA gather here; pushing it
    # in-kernel (scalar-prefetch token ids + one-hot matmul / DMA gather) would shave
    # a couple of tiny XLA ops but adds complexity at these shapes.
    emb = emb_table[x_tokens].astype(jnp.float32)                       # [B, T, E]
    emb_tm = jnp.transpose(emb, (1, 0, 2))                              # [T, B, E]
    emb_stacked = jnp.concatenate([emb_tm, emb_tm[::-1]], axis=-1)      # [T, B, 2E]
    emb_stacked = emb_stacked.reshape(T * B, 2 * E)                     # row = t*B + b

    # pack_padded_sequence lengths (padding assumed trailing).
    lens = (T - jnp.sum((x_tokens == pad_idx).astype(jnp.int32), axis=-1))
    lens = lens.astype(jnp.int32)[:, None]                              # [B, 1]

    vmem = pl.BlockSpec(memory_space=pltpu.MemorySpace.VMEM)
    logits_pad = pl.pallas_call(
        bilstm_kernel,
        out_shape=jax.ShapeDtypeStruct((B, CP), jnp.float32),
        in_specs=[vmem] * 7,
        out_specs=vmem,
        scratch_shapes=[pltpu.VMEM((T * B, 8 * H), jnp.float32)],
    )(emb_stacked, lens,
      params["wx"], params["whh"], params["b"],
      params["w_out"], params["b_out"])
    # TODO(synk): dropout path (F.dropout) not implemented — module default dropout=None.
    return logits_pad[:, :num_classes]


# ----------------------------------------------------------------------------- reference
def bilstm_reference(x_tokens, tp, *, pad_idx):
    """Plain-JAX reference with PyTorch packed-BiLSTM semantics (trailing padding)."""
    emb_table = tp["embedding"]
    B, T = x_tokens.shape
    H = tp["whh_f"].shape[1]
    emb = emb_table[x_tokens]                                           # [B, T, E]
    lens = T - jnp.sum((x_tokens == pad_idx).astype(jnp.int32), axis=-1)

    def cell(x_t, h, c, wih, whh, bih, bhh):
        g = (jnp.dot(x_t, wih.T, precision="highest") + bih
             + jnp.dot(h, whh.T, precision="highest") + bhh)
        i = jax.nn.sigmoid(g[:, 0:H]);        f = jax.nn.sigmoid(g[:, H:2 * H])
        gg = jnp.tanh(g[:, 2 * H:3 * H]);     o = jax.nn.sigmoid(g[:, 3 * H:4 * H])
        c_n = f * c + i * gg
        return o * jnp.tanh(c_n), c_n

    h_f = jnp.zeros((B, H)); c_f = jnp.zeros((B, H))
    for t in range(T):
        hn, cn = cell(emb[:, t], h_f, c_f, tp["wih_f"], tp["whh_f"],
                      tp["bih_f"], tp["bhh_f"])
        m = (t < lens)[:, None]
        h_f = jnp.where(m, hn, h_f); c_f = jnp.where(m, cn, c_f)

    h_b = jnp.zeros((B, H)); c_b = jnp.zeros((B, H))
    for t in range(T - 1, -1, -1):
        hn, cn = cell(emb[:, t], h_b, c_b, tp["wih_b"], tp["whh_b"],
                      tp["bih_b"], tp["bhh_b"])
        m = (t < lens)[:, None]
        h_b = jnp.where(m, hn, h_b); c_b = jnp.where(m, cn, c_b)

    hid = jnp.concatenate([h_f, h_b], axis=1)
    return jnp.dot(hid, tp["w_lin"].T, precision="highest") + tp["b_lin"]


# ----------------------------------------------------------------------------- main
if __name__ == "__main__":
    B, T = 8, 8
    NUM_EMB, EMB_DIM = 50, 32
    NUM_CLASSES = 5
    PAD_IDX = NUM_EMB - 1

    key = jax.random.PRNGKey(0)
    k_param, k_tok = jax.random.split(key)

    torch_params = init_torch_params(k_param, NUM_EMB, EMB_DIM, NUM_CLASSES)
    params = pack_params(torch_params)

    # Token ids with trailing padding (pack_padded_sequence requirement).
    tokens = jax.random.randint(k_tok, (B, T), 0, NUM_EMB - 1, dtype=jnp.int32)
    lens = jnp.array([8, 6, 5, 8, 3, 7, 4, 2], dtype=jnp.int32)
    x = jnp.where(jnp.arange(T)[None, :] < lens[:, None], tokens, PAD_IDX)

    logits = bilstm_forward(x, params, pad_idx=PAD_IDX, num_classes=NUM_CLASSES)
    jax.block_until_ready(logits)
    assert logits.shape == (B, NUM_CLASSES)

    ref = bilstm_reference(x, torch_params, pad_idx=PAD_IDX)
    err = float(jnp.max(jnp.abs(logits - ref)))
    assert err < 5e-2, f"kernel/reference mismatch, max abs err = {err}"

    print("KERNEL_OK")
</pallas_src>

<mosaic_0001>
module attributes {stable_mosaic.version = 11 : i64} {
  func.func @bilstm_kernel(%arg0: memref<64x64xf32, #tpu.memory_space<vmem>>, %arg1: memref<8x1xi32, #tpu.memory_space<vmem>>, %arg2: memref<64x256xf32, #tpu.memory_space<vmem>>, %arg3: memref<64x256xf32, #tpu.memory_space<vmem>>, %arg4: memref<1x256xf32, #tpu.memory_space<vmem>>, %arg5: memref<64x128xf32, #tpu.memory_space<vmem>>, %arg6: memref<1x128xf32, #tpu.memory_space<vmem>>, %arg7: memref<8x128xf32, #tpu.memory_space<vmem>>, %arg8: memref<64x256xf32, #tpu.memory_space<vmem>>) attributes {dimension_semantics = [], scalar_prefetch = 0 : i64, scratch_operands = 1 : i64, tpu.core_type = #tpu.core_type<tc>} {
    %c0 = arith.constant 0 : index
    %c0_0 = arith.constant 0 : index
    %0 = vector.load %arg0[%c0, %c0_0] : memref<64x64xf32, #tpu.memory_space<vmem>>, vector<64x64xf32>
    %c0_1 = arith.constant 0 : index
    %c0_2 = arith.constant 0 : index
    %1 = vector.load %arg2[%c0_1, %c0_2] : memref<64x256xf32, #tpu.memory_space<vmem>>, vector<64x256xf32>
    %cst = arith.constant dense<0.000000e+00> : vector<64x256xf32>
    %2 = tpu.matmul %0, %1, %cst {dimension_numbers = #tpu.dot_dimension_numbers<[1], [0], [0], [1], [0, 0, 1, 1], [], []>} : vector<64x64xf32>, vector<64x256xf32>, vector<64x256xf32> -> vector<64x256xf32>
    %c0_3 = arith.constant 0 : index
    %c0_4 = arith.constant 0 : index
    %3 = vector.load %arg4[%c0_3, %c0_4] : memref<1x256xf32, #tpu.memory_space<vmem>>, vector<1x256xf32>
    %4 = vector.broadcast %3 : vector<1x256xf32> to vector<64x256xf32>
    %5 = arith.addf %2, %4 : vector<64x256xf32>
    %c0_5 = arith.constant 0 : index
    %c0_6 = arith.constant 0 : index
    %6 = vector.load %arg8[%c0_5, %c0_6] : memref<64x256xf32, #tpu.memory_space<vmem>>, vector<64x256xf32>
    tpu.vector_store %arg8[%c0_5, %c0_6], %5 {strides = array<i32>} : memref<64x256xf32, #tpu.memory_space<vmem>>, vector<64x256xf32>,
    %c0_7 = arith.constant 0 : index
    %c0_8 = arith.constant 0 : index
    %7 = vector.load %arg3[%c0_7, %c0_8] : memref<64x256xf32, #tpu.memory_space<vmem>>, vector<64x256xf32>
    %c0_9 = arith.constant 0 : index
    %c0_10 = arith.constant 0 : index
    %8 = vector.load %arg1[%c0_9, %c0_10] : memref<8x1xi32, #tpu.memory_space<vmem>>, vector<8x1xi32>
    %9 = vector.shape_cast %8 : vector<8x1xi32> to vector<8x1xi32>
    %10 = vector.broadcast %9 : vector<8x1xi32> to vector<8x64xi32>
    %11 = tpu.iota {dimensions = array<i32: 1>} : vector<8x64xi32>
    %c32_i32 = arith.constant 32 : i32
    %12 = vector.broadcast %c32_i32 : i32 to vector<8x64xi32>
    %13 = arith.cmpi slt, %11, %12 : vector<8x64xi32>
    %cst_11 = arith.constant 0.000000e+00 : f32
    %14 = vector.broadcast %cst_11 : f32 to vector<8x64xf32>
    %cst_12 = arith.constant 0.000000e+00 : f32
    %15 = vector.broadcast %cst_12 : f32 to vector<8x64xf32>
    %c0_13 = arith.constant 0 : index
    %c0_14 = arith.constant 0 : index
    %16 = vector.load %arg8[%c0_13, %c0_14] : memref<64x256xf32, #tpu.memory_space<vmem>>, vector<8x256xf32>
    %cst_15 = arith.constant dense<0.000000e+00> : vector<8x256xf32>
    %17 = tpu.matmul %14, %7, %cst_15 {dimension_numbers = #tpu.dot_dimension_numbers<[1], [0], [0], [1], [0, 0, 1, 1], [], []>} : vector<8x64xf32>, vector<64x256xf32>, vector<8x256xf32> -> vector<8x256xf32>
    %18 = arith.addf %16, %17 : vector<8x256xf32>
    %19 = arith.negf %18 : vector<8x256xf32>
    %20 = math.exp %19 : vector<8x256xf32>
    %cst_16 = arith.constant 1.000000e+00 : f32
    %21 = vector.broadcast %cst_16 : f32 to vector<8x256xf32>
    %22 = arith.addf %21, %20 : vector<8x256xf32>
    %23 = arith.divf %21, %22 : vector<8x256xf32>
    %24 = vector.extract_strided_slice %23 {offsets = [0, 0], sizes = [8, 64], strides = [1, 1]} : vector<8x256xf32> to vector<8x64xf32>
    %25 = vector.extract_strided_slice %23 {offsets = [0, 64], sizes = [8, 64], strides = [1, 1]} : vector<8x256xf32> to vector<8x64xf32>
    %26 = vector.extract_strided_slice %18 {offsets = [0, 128], sizes = [8, 64], strides = [1, 1]} : vector<8x256xf32> to vector<8x64xf32>
    %27 = math.tanh %26 : vector<8x64xf32>
    %28 = vector.extract_strided_slice %23 {offsets = [0, 192], sizes = [8, 64], strides = [1, 1]} : vector<8x256xf32> to vector<8x64xf32>
    %29 = arith.mulf %25, %15 : vector<8x64xf32>
    %30 = arith.mulf %24, %27 : vector<8x64xf32>
    %31 = arith.addf %29, %30 : vector<8x64xf32>
    %32 = math.tanh %31 : vector<8x64xf32>
    %33 = arith.mulf %28, %32 : vector<8x64xf32>
    %c0_i32 = arith.constant 0 : i32
    %c7_i32 = arith.constant 7 : i32
    %34 = vector.broadcast %c0_i32 : i32 to vector<8x64xi32>
    %35 = vector.broadcast %c7_i32 : i32 to vector<8x64xi32>
    %36 = arith.select %13, %34, %35 : vector<8x64xi1>, vector<8x64xi32>
    %37 = arith.cmpi slt, %36, %10 : vector<8x64xi32>
    %38 = arith.select %37, %33, %14 : vector<8x64xi1>, vector<8x64xf32>
    %39 = arith.select %37, %31, %15 : vector<8x64xi1>, vector<8x64xf32>
    %c8 = arith.constant 8 : index
    %c0_17 = arith.constant 0 : index
    %40 = vector.load %arg8[%c8, %c0_17] : memref<64x256xf32, #tpu.memory_space<vmem>>, vector<8x256xf32>
    %cst_18 = arith.constant dense<0.000000e+00> : vector<8x256xf32>
    %41 = tpu.matmul %38, %7, %cst_18 {dimension_numbers = #tpu.dot_dimension_numbers<[1], [0], [0], [1], [0, 0, 1, 1], [], []>} : vector<8x64xf32>, vector<64x256xf32>, vector<8x256xf32> -> vector<8x256xf32>
    %42 = arith.addf %40, %41 : vector<8x256xf32>
    %43 = arith.negf %42 : vector<8x256xf32>
    %44 = math.exp %43 : vector<8x256xf32>
    %cst_19 = arith.constant 1.000000e+00 : f32
    %45 = vector.broadcast %cst_19 : f32 to vector<8x256xf32>
    %46 = arith.addf %45, %44 : vector<8x256xf32>
    %47 = arith.divf %45, %46 : vector<8x256xf32>
    %48 = vector.extract_strided_slice %47 {offsets = [0, 0], sizes = [8, 64], strides = [1, 1]} : vector<8x256xf32> to vector<8x64xf32>
    %49 = vector.extract_strided_slice %47 {offsets = [0, 64], sizes = [8, 64], strides = [1, 1]} : vector<8x256xf32> to vector<8x64xf32>
    %50 = vector.extract_strided_slice %42 {offsets = [0, 128], sizes = [8, 64], strides = [1, 1]} : vector<8x256xf32> to vector<8x64xf32>
    %51 = math.tanh %50 : vector<8x64xf32>
    %52 = vector.extract_strided_slice %47 {offsets = [0, 192], sizes = [8, 64], strides = [1, 1]} : vector<8x256xf32> to vector<8x64xf32>
    %53 = arith.mulf %49, %39 : vector<8x64xf32>
    %54 = arith.mulf %48, %51 : vector<8x64xf32>
    %55 = arith.addf %53, %54 : vector<8x64xf32>
    %56 = math.tanh %55 : vector<8x64xf32>
    %57 = arith.mulf %52, %56 : vector<8x64xf32>
    %c1_i32 = arith.constant 1 : i32
    %c6_i32 = arith.constant 6 : i32
    %58 = vector.broadcast %c1_i32 : i32 to vector<8x64xi32>
    %59 = vector.broadcast %c6_i32 : i32 to vector<8x64xi32>
    %60 = arith.select %13, %58, %59 : vector<8x64xi1>, vector<8x64xi32>
    %61 = arith.cmpi slt, %60, %10 : vector<8x64xi32>
    %62 = arith.select %61, %57, %38 : vector<8x64xi1>, vector<8x64xf32>
    %63 = arith.select %61, %55, %39 : vector<8x64xi1>, vector<8x64xf32>
    %c16 = arith.constant 16 : index
    %c0_20 = arith.constant 0 : index
    %64 = vector.load %arg8[%c16, %c0_20] : memref<64x256xf32, #tpu.memory_space<vmem>>, vector<8x256xf32>
    %cst_21 = arith.constant dense<0.000000e+00> : vector<8x256xf32>
    %65 = tpu.matmul %62, %7, %cst_21 {dimension_numbers = #tpu.dot_dimension_numbers<[1], [0], [0], [1], [0, 0, 1, 1], [], []>} : vector<8x64xf32>, vector<64x256xf32>, vector<8x256xf32> -> vector<8x256xf32>
    %66 = arith.addf %64, %65 : vector<8x256xf32>
    %67 = arith.negf %66 : vector<8x256xf32>
    %68 = math.exp %67 : vector<8x256xf32>
    %cst_22 = arith.constant 1.000000e+00 : f32
    %69 = vector.broadcast %cst_22 : f32 to vector<8x256xf32>
    %70 = arith.addf %69, %68 : vector<8x256xf32>
    %71 = arith.divf %69, %70 : vector<8x256xf32>
    %72 = vector.extract_strided_slice %71 {offsets = [0, 0], sizes = [8, 64], strides = [1, 1]} : vector<8x256xf32> to vector<8x64xf32>
    %73 = vector.extract_strided_slice %71 {offsets = [0, 64], sizes = [8, 64], strides = [1, 1]} : vector<8x256xf32> to vector<8x64xf32>
    %74 = vector.extract_strided_slice %66 {offsets = [0, 128], sizes = [8, 64], strides = [1, 1]} : vector<8x256xf32> to vector<8x64xf32>
    %75 = math.tanh %74 : vector<8x64xf32>
    %76 = vector.extract_strided_slice %71 {offsets = [0, 192], sizes = [8, 64], strides = [1, 1]} : vector<8x256xf32> to vector<8x64xf32>
    %77 = arith.mulf %73, %63 : vector<8x64xf32>
    %78 = arith.mulf %72, %75 : vector<8x64xf32>
    %79 = arith.addf %77, %78 : vector<8x64xf32>
    %80 = math.tanh %79 : vector<8x64xf32>
    %81 = arith.mulf %76, %80 : vector<8x64xf32>
    %c2_i32 = arith.constant 2 : i32
    %c5_i32 = arith.constant 5 : i32
    %82 = vector.broadcast %c2_i32 : i32 to vector<8x64xi32>
    %83 = vector.broadcast %c5_i32 : i32 to vector<8x64xi32>
    %84 = arith.select %13, %82, %83 : vector<8x64xi1>, vector<8x64xi32>
    %85 = arith.cmpi slt, %84, %10 : vector<8x64xi32>
    %86 = arith.select %85, %81, %62 : vector<8x64xi1>, vector<8x64xf32>
    %87 = arith.select %85, %79, %63 : vector<8x64xi1>, vector<8x64xf32>
    %c24 = arith.constant 24 : index
    %c0_23 = arith.constant 0 : index
    %88 = vector.load %arg8[%c24, %c0_23] : memref<64x256xf32, #tpu.memory_space<vmem>>, vector<8x256xf32>
    %cst_24 = arith.constant dense<0.000000e+00> : vector<8x256xf32>
    %89 = tpu.matmul %86, %7, %cst_24 {dimension_numbers = #tpu.dot_dimension_numbers<[1], [0], [0], [1], [0, 0, 1, 1], [], []>} : vector<8x64xf32>, vector<64x256xf32>, vector<8x256xf32> -> vector<8x256xf32>
    %90 = arith.addf %88, %89 : vector<8x256xf32>
    %91 = arith.negf %90 : vector<8x256xf32>
    %92 = math.exp %91 : vector<8x256xf32>
    %cst_25 = arith.constant 1.000000e+00 : f32
    %93 = vector.broadcast %cst_25 : f32 to vector<8x256xf32>
    %94 = arith.addf %93, %92 : vector<8x256xf32>
    %95 = arith.divf %93, %94 : vector<8x256xf32>
    %96 = vector.extract_strided_slice %95 {offsets = [0, 0], sizes = [8, 64], strides = [1, 1]} : vector<8x256xf32> to vector<8x64xf32>
    %97 = vector.extract_strided_slice %95 {offsets = [0, 64], sizes = [8, 64], strides = [1, 1]} : vector<8x256xf32> to vector<8x64xf32>
    %98 = vector.extract_strided_slice %90 {offsets = [0, 128], sizes = [8, 64], strides = [1, 1]} : vector<8x256xf32> to vector<8x64xf32>
    %99 = math.tanh %98 : vector<8x64xf32>
    %100 = vector.extract_strided_slice %95 {offsets = [0, 192], sizes = [8, 64], strides = [1, 1]} : vector<8x256xf32> to vector<8x64xf32>
    %101 = arith.mulf %97, %87 : vector<8x64xf32>
    %102 = arith.mulf %96, %99 : vector<8x64xf32>
    %103 = arith.addf %101, %102 : vector<8x64xf32>
    %104 = math.tanh %103 : vector<8x64xf32>
    %105 = arith.mulf %100, %104 : vector<8x64xf32>
    %c3_i32 = arith.constant 3 : i32
    %c4_i32 = arith.constant 4 : i32
    %106 = vector.broadcast %c3_i32 : i32 to vector<8x64xi32>
    %107 = vector.broadcast %c4_i32 : i32 to vector<8x64xi32>
    %108 = arith.select %13, %106, %107 : vector<8x64xi1>, vector<8x64xi32>
    %109 = arith.cmpi slt, %108, %10 : vector<8x64xi32>
    %110 = arith.select %109, %105, %86 : vector<8x64xi1>, vector<8x64xf32>
    %111 = arith.select %109, %103, %87 : vector<8x64xi1>, vector<8x64xf32>
    %c32 = arith.constant 32 : index
    %c0_26 = arith.constant 0 : index
    %112 = vector.load %arg8[%c32, %c0_26] : memref<64x256xf32, #tpu.memory_space<vmem>>, vector<8x256xf32>
    %cst_27 = arith.constant dense<0.000000e+00> : vector<8x256xf32>
    %113 = tpu.matmul %110, %7, %cst_27 {dimension_numbers = #tpu.dot_dimension_numbers<[1], [0], [0], [1], [0, 0, 1, 1], [], []>} : vector<8x64xf32>, vector<64x256xf32>, vector<8x256xf32> -> vector<8x256xf32>
    %114 = arith.addf %112, %113 : vector<8x256xf32>
    %115 = arith.negf %114 : vector<8x256xf32>
    %116 = math.exp %115 : vector<8x256xf32>
    %cst_28 = arith.constant 1.000000e+00 : f32
    %117 = vector.broadcast %cst_28 : f32 to vector<8x256xf32>
    %118 = arith.addf %117, %116 : vector<8x256xf32>
    %119 = arith.divf %117, %118 : vector<8x256xf32>
    %120 = vector.extract_strided_slice %119 {offsets = [0, 0], sizes = [8, 64], strides = [1, 1]} : vector<8x256xf32> to vector<8x64xf32>
    %121 = vector.extract_strided_slice %119 {offsets = [0, 64], sizes = [8, 64], strides = [1, 1]} : vector<8x256xf32> to vector<8x64xf32>
    %122 = vector.extract_strided_slice %114 {offsets = [0, 128], sizes = [8, 64], strides = [1, 1]} : vector<8x256xf32> to vector<8x64xf32>
    %123 = math.tanh %122 : vector<8x64xf32>
    %124 = vector.extract_strided_slice %119 {offsets = [0, 192], sizes = [8, 64], strides = [1, 1]} : vector<8x256xf32> to vector<8x64xf32>
    %125 = arith.mulf %121, %111 : vector<8x64xf32>
    %126 = arith.mulf %120, %123 : vector<8x64xf32>
    %127 = arith.addf %125, %126 : vector<8x64xf32>
    %128 = math.tanh %127 : vector<8x64xf32>
    %129 = arith.mulf %124, %128 : vector<8x64xf32>
    %c4_i32_29 = arith.constant 4 : i32
    %c3_i32_30 = arith.constant 3 : i32
    %130 = vector.broadcast %c4_i32_29 : i32 to vector<8x64xi32>
    %131 = vector.broadcast %c3_i32_30 : i32 to vector<8x64xi32>
    %132 = arith.select %13, %130, %131 : vector<8x64xi1>, vector<8x64xi32>
    %133 = arith.cmpi slt, %132, %10 : vector<8x64xi32>
    %134 = arith.select %133, %129, %110 : vector<8x64xi1>, vector<8x64xf32>
    %135 = arith.select %133, %127, %111 : vector<8x64xi1>, vector<8x64xf32>
    %c40 = arith.constant 40 : index
    %c0_31 = arith.constant 0 : index
    %136 = vector.load %arg8[%c40, %c0_31] : memref<64x256xf32, #tpu.memory_space<vmem>>, vector<8x256xf32>
    %cst_32 = arith.constant dense<0.000000e+00> : vector<8x256xf32>
    %137 = tpu.matmul %134, %7, %cst_32 {dimension_numbers = #tpu.dot_dimension_numbers<[1], [0], [0], [1], [0, 0, 1, 1], [], []>} : vector<8x64xf32>, vector<64x256xf32>, vector<8x256xf32> -> vector<8x256xf32>
    %138 = arith.addf %136, %137 : vector<8x256xf32>
    %139 = arith.negf %138 : vector<8x256xf32>
    %140 = math.exp %139 : vector<8x256xf32>
    %cst_33 = arith.constant 1.000000e+00 : f32
    %141 = vector.broadcast %cst_33 : f32 to vector<8x256xf32>
    %142 = arith.addf %141, %140 : vector<8x256xf32>
    %143 = arith.divf %141, %142 : vector<8x256xf32>
    %144 = vector.extract_strided_slice %143 {offsets = [0, 0], sizes = [8, 64], strides = [1, 1]} : vector<8x256xf32> to vector<8x64xf32>
    %145 = vector.extract_strided_slice %143 {offsets = [0, 64], sizes = [8, 64], strides = [1, 1]} : vector<8x256xf32> to vector<8x64xf32>
    %146 = vector.extract_strided_slice %138 {offsets = [0, 128], sizes = [8, 64], strides = [1, 1]} : vector<8x256xf32> to vector<8x64xf32>
    %147 = math.tanh %146 : vector<8x64xf32>
    %148 = vector.extract_strided_slice %143 {offsets = [0, 192], sizes = [8, 64], strides = [1, 1]} : vector<8x256xf32> to vector<8x64xf32>
    %149 = arith.mulf %145, %135 : vector<8x64xf32>
    %150 = arith.mulf %144, %147 : vector<8x64xf32>
    %151 = arith.addf %149, %150 : vector<8x64xf32>
    %152 = math.tanh %151 : vector<8x64xf32>
    %153 = arith.mulf %148, %152 : vector<8x64xf32>
    %c5_i32_34 = arith.constant 5 : i32
    %c2_i32_35 = arith.constant 2 : i32
    %154 = vector.broadcast %c5_i32_34 : i32 to vector<8x64xi32>
    %155 = vector.broadcast %c2_i32_35 : i32 to vector<8x64xi32>
    %156 = arith.select %13, %154, %155 : vector<8x64xi1>, vector<8x64xi32>
    %157 = arith.cmpi slt, %156, %10 : vector<8x64xi32>
    %158 = arith.select %157, %153, %134 : vector<8x64xi1>, vector<8x64xf32>
    %159 = arith.select %157, %151, %135 : vector<8x64xi1>, vector<8x64xf32>
    %c48 = arith.constant 48 : index
    %c0_36 = arith.constant 0 : index
    %160 = vector.load %arg8[%c48, %c0_36] : memref<64x256xf32, #tpu.memory_space<vmem>>, vector<8x256xf32>
    %cst_37 = arith.constant dense<0.000000e+00> : vector<8x256xf32>
    %161 = tpu.matmul %158, %7, %cst_37 {dimension_numbers = #tpu.dot_dimension_numbers<[1], [0], [0], [1], [0, 0, 1, 1], [], []>} : vector<8x64xf32>, vector<64x256xf32>, vector<8x256xf32> -> vector<8x256xf32>
    %162 = arith.addf %160, %161 : vector<8x256xf32>
    %163 = arith.negf %162 : vector<8x256xf32>
    %164 = math.exp %163 : vector<8x256xf32>
    %cst_38 = arith.constant 1.000000e+00 : f32
    %165 = vector.broadcast %cst_38 : f32 to vector<8x256xf32>
    %166 = arith.addf %165, %164 : vector<8x256xf32>
    %167 = arith.divf %165, %166 : vector<8x256xf32>
    %168 = vector.extract_strided_slice %167 {offsets = [0, 0], sizes = [8, 64], strides = [1, 1]} : vector<8x256xf32> to vector<8x64xf32>
    %169 = vector.extract_strided_slice %167 {offsets = [0, 64], sizes = [8, 64], strides = [1, 1]} : vector<8x256xf32> to vector<8x64xf32>
    %170 = vector.extract_strided_slice %162 {offsets = [0, 128], sizes = [8, 64], strides = [1, 1]} : vector<8x256xf32> to vector<8x64xf32>
    %171 = math.tanh %170 : vector<8x64xf32>
    %172 = vector.extract_strided_slice %167 {offsets = [0, 192], sizes = [8, 64], strides = [1, 1]} : vector<8x256xf32> to vector<8x64xf32>
    %173 = arith.mulf %169, %159 : vector<8x64xf32>
    %174 = arith.mulf %168, %171 : vector<8x64xf32>
    %175 = arith.addf %173, %174 : vector<8x64xf32>
    %176 = math.tanh %175 : vector<8x64xf32>
    %177 = arith.mulf %172, %176 : vector<8x64xf32>
    %c6_i32_39 = arith.constant 6 : i32
    %c1_i32_40 = arith.constant 1 : i32
    %178 = vector.broadcast %c6_i32_39 : i32 to vector<8x64xi32>
    %179 = vector.broadcast %c1_i32_40 : i32 to vector<8x64xi32>
    %180 = arith.select %13, %178, %179 : vector<8x64xi1>, vector<8x64xi32>
    %181 = arith.cmpi slt, %180, %10 : vector<8x64xi32>
    %182 = arith.select %181, %177, %158 : vector<8x64xi1>, vector<8x64xf32>
    %183 = arith.select %181, %175, %159 : vector<8x64xi1>, vector<8x64xf32>
    %c56 = arith.constant 56 : index
    %c0_41 = arith.constant 0 : index
    %184 = vector.load %arg8[%c56, %c0_41] : memref<64x256xf32, #tpu.memory_space<vmem>>, vector<8x256xf32>
    %cst_42 = arith.constant dense<0.000000e+00> : vector<8x256xf32>
    %185 = tpu.matmul %182, %7, %cst_42 {dimension_numbers = #tpu.dot_dimension_numbers<[1], [0], [0], [1], [0, 0, 1, 1], [], []>} : vector<8x64xf32>, vector<64x256xf32>, vector<8x256xf32> -> vector<8x256xf32>
    %186 = arith.addf %184, %185 : vector<8x256xf32>
    %187 = arith.negf %186 : vector<8x256xf32>
    %188 = math.exp %187 : vector<8x256xf32>
    %cst_43 = arith.constant 1.000000e+00 : f32
    %189 = vector.broadcast %cst_43 : f32 to vector<8x256xf32>
    %190 = arith.addf %189, %188 : vector<8x256xf32>
    %191 = arith.divf %189, %190 : vector<8x256xf32>
    %192 = vector.extract_strided_slice %191 {offsets = [0, 0], sizes = [8, 64], strides = [1, 1]} : vector<8x256xf32> to vector<8x64xf32>
    %193 = vector.extract_strided_slice %191 {offsets = [0, 64], sizes = [8, 64], strides = [1, 1]} : vector<8x256xf32> to vector<8x64xf32>
    %194 = vector.extract_strided_slice %186 {offsets = [0, 128], sizes = [8, 64], strides = [1, 1]} : vector<8x256xf32> to vector<8x64xf32>
    %195 = math.tanh %194 : vector<8x64xf32>
    %196 = vector.extract_strided_slice %191 {offsets = [0, 192], sizes = [8, 64], strides = [1, 1]} : vector<8x256xf32> to vector<8x64xf32>
    %197 = arith.mulf %193, %183 : vector<8x64xf32>
    %198 = arith.mulf %192, %195 : vector<8x64xf32>
    %199 = arith.addf %197, %198 : vector<8x64xf32>
    %200 = math.tanh %199 : vector<8x64xf32>
    %201 = arith.mulf %196, %200 : vector<8x64xf32>
    %c7_i32_44 = arith.constant 7 : i32
    %c0_i32_45 = arith.constant 0 : i32
    %202 = vector.broadcast %c7_i32_44 : i32 to vector<8x64xi32>
    %203 = vector.broadcast %c0_i32_45 : i32 to vector<8x64xi32>
    %204 = arith.select %13, %202, %203 : vector<8x64xi1>, vector<8x64xi32>
    %205 = arith.cmpi slt, %204, %10 : vector<8x64xi32>
    %206 = arith.select %205, %201, %182 : vector<8x64xi1>, vector<8x64xf32>
    %c0_46 = arith.constant 0 : index
    %c0_47 = arith.constant 0 : index
    %207 = vector.load %arg5[%c0_46, %c0_47] : memref<64x128xf32, #tpu.memory_space<vmem>>, vector<64x128xf32>
    %cst_48 = arith.constant dense<0.000000e+00> : vector<8x128xf32>
    %208 = tpu.matmul %206, %207, %cst_48 {dimension_numbers = #tpu.dot_dimension_numbers<[1], [0], [0], [1], [0, 0, 1, 1], [], []>} : vector<8x64xf32>, vector<64x128xf32>, vector<8x128xf32> -> vector<8x128xf32>
    %c0_49 = arith.constant 0 : index
    %c0_50 = arith.constant 0 : index
    %209 = vector.load %arg6[%c0_49, %c0_50] : memref<1x128xf32, #tpu.memory_space<vmem>>, vector<1x128xf32>
    %210 = vector.broadcast %209 : vector<1x128xf32> to vector<8x128xf32>
    %211 = arith.addf %208, %210 : vector<8x128xf32>
    %c0_51 = arith.constant 0 : index
    %c0_52 = arith.constant 0 : index
    %212 = vector.load %arg7[%c0_51, %c0_52] : memref<8x128xf32, #tpu.memory_space<vmem>>, vector<8x128xf32>
    tpu.vector_store %arg7[%c0_51, %c0_52], %211 {strides = array<i32>} : memref<8x128xf32, #tpu.memory_space<vmem>>, vector<8x128xf32>,
    return
  }
}

</mosaic_0001>

<llo_original>
// kernel: bilstm_forward.1
$region0: #{bilstm_forward.1}
  #allocation0 [shape = 'u32[]', space=smem, size = 0x4, offset = 0x4, fixed_abs, tag = 'smem constant byte address 0x4 - core index']
  #allocation1 [shape = 'u32[144,128]{1,0:T(1,128)}', space=vmem, size = 0x12000, scoped, tag = 'internal scratch']
  #allocation2 [shape = 'f32[64,256]{1,0:T(8,128)}', space=vmem, size = 0x10000, scoped, tag = 'scratch operand']
  %s0 = inlined_call_operand.vmem [shape: f32[64,64], index: 0, kind: input, shape index: {}]
  %s1 = inlined_call_operand.vmem [shape: s32[8,1], index: 1, kind: input, shape index: {}]
  %s2 = inlined_call_operand.vmem [shape: f32[64,256], index: 2, kind: input, shape index: {}]
  %s3 = inlined_call_operand.vmem [shape: f32[64,256], index: 3, kind: input, shape index: {}]
  %s4 = inlined_call_operand.vmem [shape: f32[1,256], index: 4, kind: input, shape index: {}]
  %s5 = inlined_call_operand.vmem [shape: f32[64,128], index: 5, kind: input, shape index: {}]
  %s6 = inlined_call_operand.vmem [shape: f32[1,128], index: 6, kind: input, shape index: {}]
  %s7 = inlined_call_operand.hbm [shape: f32[8,128], index: 7, kind: output, shape index: {}]
  %s8 = sld [smem:[#allocation0]]
  $region38: #{bilstm_forward.1} parent=0
    _
  %s10 = ssub.s32 1, %s8
  %s11 = scalar_select 0, %s10, %s8
  $region1: #{bilstm_forward.1} parent=0
    #allocation3 [shape = 'u8[4096]{0}', space=vmem, size = 0x1000, scoped, tag = 'output window, operand 0, single buffered']
    #allocation4 [shape = 's32[1]{0}', space=sflag, size = 0x4, scoped, tag = 'scoped memory for bilstm_forward.1']
    %12 = vsyncpa [#allocation4], 0
    // Predicated region
    $region2: #{bilstm_forward.1} parent=1 // pred_check
      _
    $region3: #{bilstm_forward.1} parent=1 // pred_check_branch
      %14 = sbr.rel (0) target = $region5
    $region4: #{bilstm_forward.1} parent=1 // pred_region
      _
    $region5: #{bilstm_forward.1} parent=1 // pred_fallthru
      _
    // Predicated region
    $region6: #{bilstm_forward.1} parent=1 // pred_check
      _
    $region7: #{bilstm_forward.1} parent=1 // pred_check_branch
      %16 = sbr.rel (0) target = $region9
    $region8: #{bilstm_forward.1} parent=1 // pred_region
      _
    $region9: #{bilstm_forward.1} parent=1 // pred_fallthru
      _
    // Predicated region
    $region10: #{bilstm_forward.1} parent=1 // pred_check
      _
    $region11: #{bilstm_forward.1} parent=1 // pred_check_branch
      %18 = sbr.rel (0) target = $region13
    $region12: #{bilstm_forward.1} parent=1 // pred_region
      _
    $region13: #{bilstm_forward.1} parent=1 // pred_fallthru
      _
    // Predicated region
    $region14: #{bilstm_forward.1} parent=1 // pred_check
      _
    $region15: #{bilstm_forward.1} parent=1 // pred_check_branch
      %20 = sbr.rel (0) target = $region17
    $region16: #{bilstm_forward.1} parent=1 // pred_region
      _
    $region17: #{bilstm_forward.1} parent=1 // pred_fallthru
      _
    // Predicated region
    $region18: #{bilstm_forward.1} parent=1 // pred_check
      _
    $region19: #{bilstm_forward.1} parent=1 // pred_check_branch
      %22 = sbr.rel (0) target = $region21
    $region20: #{bilstm_forward.1} parent=1 // pred_region
      _
    $region21: #{bilstm_forward.1} parent=1 // pred_fallthru
      _
    // Predicated region
    $region22: #{bilstm_forward.1} parent=1 // pred_check
      _
    $region23: #{bilstm_forward.1} parent=1 // pred_check_branch
      %24 = sbr.rel (0) target = $region25
    $region24: #{bilstm_forward.1} parent=1 // pred_region
      _
    $region25: #{bilstm_forward.1} parent=1 // pred_fallthru
      _
    // Predicated region
    $region26: #{bilstm_forward.1} parent=1 // pred_check
      _
    $region27: #{bilstm_forward.1} parent=1 // pred_check_branch
      %26 = sbr.rel (0) target = $region29
    $region28: #{bilstm_forward.1} parent=1 // pred_region
      _
    $region29: #{bilstm_forward.1} parent=1 // pred_fallthru
      _
    %v27 = vld [vmem:[%s0] sm:$0xff]
    %v28 = vld [vmem:[%s0 + $0x8] sm:$0xff]
    %v29 = vld [vmem:[%s0 + $0x10] sm:$0xff]
    %v30 = vld [vmem:[%s0 + $0x18] sm:$0xff]
    %v31 = vld [vmem:[%s0 + $0x20] sm:$0xff]
    %v32 = vld [vmem:[%s0 + $0x28] sm:$0xff]
    %v33 = vld [vmem:[%s0 + $0x30] sm:$0xff]
    %v34 = vld [vmem:[%s0 + $0x38] sm:$0xff]
    %v35 = vld [vmem:[%s2] sm:$0xff]
    %v36 = vld [vmem:[%s2 + $0x8] sm:$0xff]
    %v37 = vld [vmem:[%s2 + $0x10] sm:$0xff]
    %v38 = vld [vmem:[%s2 + $0x18] sm:$0xff]
    %v39 = vld [vmem:[%s2 + $0x20] sm:$0xff]
    %v40 = vld [vmem:[%s2 + $0x28] sm:$0xff]
    %v41 = vld [vmem:[%s2 + $0x30] sm:$0xff]
    %v42 = vld [vmem:[%s2 + $0x38] sm:$0xff]
    %v43 = vld [vmem:[%s2 + $0x40] sm:$0xff]
    %v44 = vld [vmem:[%s2 + $0x48] sm:$0xff]
    %v45 = vld [vmem:[%s2 + $0x50] sm:$0xff]
    %v46 = vld [vmem:[%s2 + $0x58] sm:$0xff]
    %v47 = vld [vmem:[%s2 + $0x60] sm:$0xff]
    %v48 = vld [vmem:[%s2 + $0x68] sm:$0xff]
    %v49 = vld [vmem:[%s2 + $0x70] sm:$0xff]
    %v50 = vld [vmem:[%s2 + $0x78] sm:$0xff]
    %v51 = vld [vmem:[%s4] sm:$0x3]
    %v53 = vlaneseq
    %v54 = vshrl.u32 %v53, 7
    %v55 = vsub.s32 0, %v54
    %v56 = vrot.slane %v51, %v55
    %v57 = vlaneseq
    %v58 = vshrl.u32 %v57, 7
    %v59 = vsub.s32 1, %v58
    %v60 = vrot.slane %v51, %v59
    %vm63 = vcmask 523264
    %v65 = vsel %vm63, %v27, 0
    %v68 = vsel %vm63, %v28, 0
    %v71 = vsel %vm63, %v29, 0
    %v74 = vsel %vm63, %v30, 0
    %v77 = vsel %vm63, %v31, 0
    %v80 = vsel %vm63, %v32, 0
    %v83 = vsel %vm63, %v33, 0
    %v86 = vsel %vm63, %v34, 0
    %88 = vmatprep.subr.mxu0 %v36
    %89 = vmatpush1.msra.mxu0 %v35
    %90 = vmatprep.subr.mxu0 %v38
    %91 = vmatpush1.msra.mxu0 %v37
    %92 = vmatprep.subr.mxu0 %v40
    %93 = vmatpush1.msra.mxu0 %v39
    %94 = vmatprep.subr.mxu0 %v42
    %95 = vmatpush1.msra.mxu0 %v41
    %96 = vmatprep.subr.mxu0 %v44
    %97 = vmatpush1.msra.mxu0 %v43
    %98 = vmatprep.subr.mxu0 %v46
    %99 = vmatpush1.msra.mxu0 %v45
    %100 = vmatprep.subr.mxu0 %v48
    %101 = vmatpush1.msra.mxu0 %v47
    %102 = vmatprep.subr.mxu0 %v50
    %103 = vmatpush1.msra.mxu0 %v49
    %104 = vmatprep.subr.mxu0 0.0
    %105 = vmatpush1.msra.mxu0 0.0
    %106 = vmatprep.subr.mxu0 0.0
    %107 = vmatpush1.msra.mxu0 0.0
    %108 = vmatprep.subr.mxu0 0.0
    %109 = vmatpush1.msra.mxu0 0.0
    %110 = vmatprep.subr.mxu0 0.0
    %111 = vmatpush1.msra.mxu0 0.0
    %112 = vmatprep.subr.mxu0 0.0
    %113 = vmatpush1.msra.mxu0 0.0
    %114 = vmatprep.subr.mxu0 0.0
    %115 = vmatpush1.msra.mxu0 0.0
    %116 = vmatprep.subr.mxu0 0.0
    %117 = vmatpush1.msra.mxu0 0.0
    %118 = vmatprep.subr.mxu0 0.0
    %119 = vmatpush1.msra.mxu0 0.0
    %120 = vmatprep.subr.mxu0 0.0
    %121 = vmatpush1.msra.mxu0 0.0
    %122 = vmatprep.subr.mxu0 0.0
    %123 = vmatpush1.msra.mxu0 0.0
    %124 = vmatprep.subr.mxu0 0.0
    %125 = vmatpush1.msra.mxu0 0.0
    %126 = vmatprep.subr.mxu0 0.0
    %127 = vmatpush1.msra.mxu0 0.0
    %128 = vmatprep.subr.mxu0 0.0
    %129 = vmatpush1.msra.mxu0 0.0
    %130 = vmatprep.subr.mxu0 0.0
    %131 = vmatpush1.msra.mxu0 0.0
    %132 = vmatprep.subr.mxu0 0.0
    %133 = vmatpush1.msra.mxu0 0.0
    %134 = vmatprep.subr.mxu0 0.0
    %135 = vmatpush1.msra.mxu0 0.0
    %136 = vmatprep.subr.mxu0 0.0
    %137 = vmatpush1.msra.mxu0 0.0
    %138 = vmatprep.subr.mxu0 0.0
    %139 = vmatpush1.msra.mxu0 0.0
    %140 = vmatprep.subr.mxu0 0.0
    %141 = vmatpush1.msra.mxu0 0.0
    %142 = vmatprep.subr.mxu0 0.0
    %143 = vmatpush1.msra.mxu0 0.0
    %144 = vmatprep.subr.mxu0 0.0
    %145 = vmatpush1.msra.mxu0 0.0
    %146 = vmatprep.subr.mxu0 0.0
    %147 = vmatpush1.msra.mxu0 0.0
    %148 = vmatprep.subr.mxu0 0.0
    %149 = vmatpush1.msra.mxu0 0.0
    %150 = vmatprep.subr.mxu0 0.0
    %151 = vmatpush1.msra.mxu0 0.0
    %152 = vmatprep.mubr.f32.mxu0 0.0
    %153 = vmatmul.mubr.f32.gmra.mrb[0].mxu0 %v65
    %v154 = vpop.f32.mrb[0].mxu0
    %v155 = vadd.f32 %v56, %v154
    %v156 = vpop.f32.mrb[0].mxu0
    %v157 = vadd.f32 %v60, %v156
    %158 = vmatprep.mubr.f32.mxu0 0.0
    %159 = vmatmul.mubr.f32.gmra.mrb[0].mxu0 %v68
    %v160 = vpop.f32.mrb[0].mxu0
    %v161 = vadd.f32 %v56, %v160
    %v162 = vpop.f32.mrb[0].mxu0
    %v163 = vadd.f32 %v60, %v162
    %164 = vmatprep.mubr.f32.mxu0 0.0
    %165 = vmatmul.mubr.f32.gmra.mrb[0].mxu0 %v71
    %v166 = vpop.f32.mrb[0].mxu0
    %v167 = vadd.f32 %v56, %v166
    %v168 = vpop.f32.mrb[0].mxu0
    %v169 = vadd.f32 %v60, %v168
    %170 = vmatprep.mubr.f32.mxu0 0.0
    %171 = vmatmul.mubr.f32.gmra.mrb[0].mxu0 %v74
    %v172 = vpop.f32.mrb[0].mxu0
    %v173 = vadd.f32 %v56, %v172
    %v174 = vpop.f32.mrb[0].mxu0
    %v175 = vadd.f32 %v60, %v174
    %176 = vmatprep.mubr.f32.mxu0 0.0
    %177 = vmatmul.mubr.f32.gmra.mrb[0].mxu0 %v77
    %v178 = vpop.f32.mrb[0].mxu0
    %v179 = vadd.f32 %v56, %v178
    %v180 = vpop.f32.mrb[0].mxu0
    %v181 = vadd.f32 %v60, %v180
    %182 = vmatprep.mubr.f32.mxu0 0.0
    %183 = vmatmul.mubr.f32.gmra.mrb[0].mxu0 %v80
    %v184 = vpop.f32.mrb[0].mxu0
    %v185 = vadd.f32 %v56, %v184
    %v186 = vpop.f32.mrb[0].mxu0
    %v187 = vadd.f32 %v60, %v186
    %188 = vmatprep.mubr.f32.mxu0 0.0
    %189 = vmatmul.mubr.f32.gmra.mrb[0].mxu0 %v83
    %v190 = vpop.f32.mrb[0].mxu0
    %v191 = vadd.f32 %v56, %v190
    %v192 = vpop.f32.mrb[0].mxu0
    %v193 = vadd.f32 %v60, %v192
    %194 = vmatprep.mubr.f32.mxu0 0.0
    %195 = vmatmul.mubr.f32.gmra.mrb[0].mxu0 %v86
    %v196 = vpop.f32.mrb[0].mxu0
    %v197 = vadd.f32 %v56, %v196
    %v198 = vpop.f32.mrb[0].mxu0
    %v199 = vadd.f32 %v60, %v198
    %200 = vdwg.mxu0
    %201 = vst [vmem:[#allocation2] sm:$0xff] %v155
    %202 = vst [vmem:[#allocation2 + $0x8] sm:$0xff] %v157
    %203 = vst [vmem:[#allocation2 + $0x10] sm:$0xff] %v161
    %204 = vst [vmem:[#allocation2 + $0x18] sm:$0xff] %v163
    %205 = vst [vmem:[#allocation2 + $0x20] sm:$0xff] %v167
    %206 = vst [vmem:[#allocation2 + $0x28] sm:$0xff] %v169
    %207 = vst [vmem:[#allocation2 + $0x30] sm:$0xff] %v173
    %208 = vst [vmem:[#allocation2 + $0x38] sm:$0xff] %v175
    %209 = vst [vmem:[#allocation2 + $0x40] sm:$0xff] %v179
    %210 = vst [vmem:[#allocation2 + $0x48] sm:$0xff] %v181
    %211 = vst [vmem:[#allocation2 + $0x50] sm:$0xff] %v185
    %212 = vst [vmem:[#allocation2 + $0x58] sm:$0xff] %v187
    %213 = vst [vmem:[#allocation2 + $0x60] sm:$0xff] %v191
    %214 = vst [vmem:[#allocation2 + $0x68] sm:$0xff] %v193
    %215 = vst [vmem:[#allocation2 + $0x70] sm:$0xff] %v197
    %216 = vst [vmem:[#allocation2 + $0x78] sm:$0xff] %v199
    %v217 = vld [vmem:[%s3] sm:$0xff]
    %v218 = vld [vmem:[%s3 + $0x8] sm:$0xff]
    %v219 = vld [vmem:[%s3 + $0x10] sm:$0xff]
    %v220 = vld [vmem:[%s3 + $0x18] sm:$0xff]
    %v221 = vld [vmem:[%s3 + $0x20] sm:$0xff]
    %v222 = vld [vmem:[%s3 + $0x28] sm:$0xff]
    %v223 = vld [vmem:[%s3 + $0x30] sm:$0xff]
    %v224 = vld [vmem:[%s3 + $0x38] sm:$0xff]
    %v225 = vld [vmem:[%s3 + $0x40] sm:$0xff]
    %v226 = vld [vmem:[%s3 + $0x48] sm:$0xff]
    %v227 = vld [vmem:[%s3 + $0x50] sm:$0xff]
    %v228 = vld [vmem:[%s3 + $0x58] sm:$0xff]
    %v229 = vld [vmem:[%s3 + $0x60] sm:$0xff]
    %v230 = vld [vmem:[%s3 + $0x68] sm:$0xff]
    %v231 = vld [vmem:[%s3 + $0x70] sm:$0xff]
    %v232 = vld [vmem:[%s3 + $0x78] sm:$0xff]
    %v233 = vld [vmem:[%s1] sm:$0xff]
    %234 = vset.pattern.permute.xlu0 0
    %235 = vperm.xlu0 %234, %v233
    %v236 = vpop.permute.xlu0 %235
    %v237 = vlaneseq
    %v238 = vand.u32 %v237, 127
    %vm239 = vcmp.lt.s32.totalorder %v238, 32
    %v240 = vld [vmem:[#allocation2] sm:$0xff]
    %v241 = vld [vmem:[#allocation2 + $0x8] sm:$0xff]
    %v243 = vsel %vm63, 0.0, 0
    %245 = vmatprep.subr.mxu0 %v218
    %246 = vmatpush1.msra.mxu0 %v217
    %247 = vmatprep.subr.mxu0 %v220
    %248 = vmatpush1.msra.mxu0 %v219
    %249 = vmatprep.subr.mxu0 %v222
    %250 = vmatpush1.msra.mxu0 %v221
    %251 = vmatprep.subr.mxu0 %v224
    %252 = vmatpush1.msra.mxu0 %v223
    %253 = vmatprep.subr.mxu0 %v226
    %254 = vmatpush1.msra.mxu0 %v225
    %255 = vmatprep.subr.mxu0 %v228
    %256 = vmatpush1.msra.mxu0 %v227
    %257 = vmatprep.subr.mxu0 %v230
    %258 = vmatpush1.msra.mxu0 %v229
    %259 = vmatprep.subr.mxu0 %v232
    %260 = vmatpush1.msra.mxu0 %v231
    %261 = vmatprep.subr.mxu0 0.0
    %262 = vmatpush1.msra.mxu0 0.0
    %263 = vmatprep.subr.mxu0 0.0
    %264 = vmatpush1.msra.mxu0 0.0
    %265 = vmatprep.subr.mxu0 0.0
    %266 = vmatpush1.msra.mxu0 0.0
    %267 = vmatprep.subr.mxu0 0.0
    %268 = vmatpush1.msra.mxu0 0.0
    %269 = vmatprep.subr.mxu0 0.0
    %270 = vmatpush1.msra.mxu0 0.0
    %271 = vmatprep.subr.mxu0 0.0
    %272 = vmatpush1.msra.mxu0 0.0
    %273 = vmatprep.subr.mxu0 0.0
    %274 = vmatpush1.msra.mxu0 0.0
    %275 = vmatprep.subr.mxu0 0.0
    %276 = vmatpush1.msra.mxu0 0.0
    %277 = vmatprep.subr.mxu0 0.0
    %278 = vmatpush1.msra.mxu0 0.0
    %279 = vmatprep.subr.mxu0 0.0
    %280 = vmatpush1.msra.mxu0 0.0
    %281 = vmatprep.subr.mxu0 0.0
    %282 = vmatpush1.msra.mxu0 0.0
    %283 = vmatprep.subr.mxu0 0.0
    %284 = vmatpush1.msra.mxu0 0.0
    %285 = vmatprep.subr.mxu0 0.0
    %286 = vmatpush1.msra.mxu0 0.0
    %287 = vmatprep.subr.mxu0 0.0
    %288 = vmatpush1.msra.mxu0 0.0
    %289 = vmatprep.subr.mxu0 0.0
    %290 = vmatpush1.msra.mxu0 0.0
    %291 = vmatprep.subr.mxu0 0.0
    %292 = vmatpush1.msra.mxu0 0.0
    %293 = vmatprep.subr.mxu0 0.0
    %294 = vmatpush1.msra.mxu0 0.0
    %295 = vmatprep.subr.mxu0 0.0
    %296 = vmatpush1.msra.mxu0 0.0
    %297 = vmatprep.subr.mxu0 0.0
    %298 = vmatpush1.msra.mxu0 0.0
    %299 = vmatprep.subr.mxu0 0.0
    %300 = vmatpush1.msra.mxu0 0.0
    %301 = vmatprep.subr.mxu0 0.0
    %302 = vmatpush1.msra.mxu0 0.0
    %303 = vmatprep.subr.mxu0 0.0
    %304 = vmatpush1.msra.mxu0 0.0
    %305 = vmatprep.subr.mxu0 0.0
    %306 = vmatpush1.msra.mxu0 0.0
    %307 = vmatprep.subr.mxu0 0.0
    %308 = vmatpush1.msra.mxu0 0.0
    %309 = vmatprep.mubr.f32.mxu0 0.0
    %310 = vmatmul.mubr.f32.gmra.mrb[0].mxu0 %v243
    %v311 = vpop.f32.mrb[0].mxu0
    %v312 = vadd.f32 0.0, %v311
    %v313 = vpop.f32.mrb[0].mxu0
    %v314 = vadd.f32 0.0, %v313
    %315 = vdwg.mxu0
    %v316 = vadd.f32 %v240, %v312
    %v317 = vadd.f32 %v241, %v314
    %v318 = vxor.u32 %v316, 2147483648
    %v319 = vxor.u32 %v317, 2147483648
    %v320 = vmul.f32 %v318, 1.442695
    %v321 = vpow.pop %v320
    %v322 = vmul.f32 %v319, 1.442695
    %v323 = vpow.pop %v322
    %v324 = vadd.f32 %v321, 1.0
    %v325 = vadd.f32 %v323, 1.0
    %v326 = vrcp.pop %v324
    %v327 = vmul.f32 1.0, %v326
    %v328 = vrcp.pop %v325
    %v329 = vmul.f32 1.0, %v328
    %v330 = vtanh.pop %v317
    %v331 = vmul.f32 %v327, 0.0
    %v332 = vmul.f32 %v327, %v330
    %334 = vrot.lane.b32.xlu0 %v332, 64
    %v335 = vpop.permute.xlu0 %334
    %v337 = vadd.f32 %v331, %v335
    %v338 = vtanh.pop %v337
    %v339 = vmul.f32 %v329, %v338
    %v340 = vsel %vm239, 0, 7
    %vm341 = vcmp.lt.s32.totalorder %v340, %v236
    %343 = vrot.lane.b32.xlu0 %v339, 64
    %v344 = vpop.permute.xlu0 %343
    %v346 = vsel %vm341, %v344, 0.0
    %348 = vrot.lane.b32.xlu0 %v337, 64
    %v349 = vpop.permute.xlu0 %348
    %v351 = vsel %vm341, %v349, 0.0
    %v352 = vld [vmem:[#allocation2 + $0x10] sm:$0xff]
    %v353 = vld [vmem:[#allocation2 + $0x18] sm:$0xff]
    %v355 = vsel %vm63, %v346, 0
    %357 = vmatprep.subr.mxu0 %v218
    %358 = vmatpush1.msra.mxu0 %v217
    %359 = vmatprep.subr.mxu0 %v220
    %360 = vmatpush1.msra.mxu0 %v219
    %361 = vmatprep.subr.mxu0 %v222
    %362 = vmatpush1.msra.mxu0 %v221
    %363 = vmatprep.subr.mxu0 %v224
    %364 = vmatpush1.msra.mxu0 %v223
    %365 = vmatprep.subr.mxu0 %v226
    %366 = vmatpush1.msra.mxu0 %v225
    %367 = vmatprep.subr.mxu0 %v228
    %368 = vmatpush1.msra.mxu0 %v227
    %369 = vmatprep.subr.mxu0 %v230
    %370 = vmatpush1.msra.mxu0 %v229
    %371 = vmatprep.subr.mxu0 %v232
    %372 = vmatpush1.msra.mxu0 %v231
    %373 = vmatprep.subr.mxu0 0.0
    %374 = vmatpush1.msra.mxu0 0.0
    %375 = vmatprep.subr.mxu0 0.0
    %376 = vmatpush1.msra.mxu0 0.0
    %377 = vmatprep.subr.mxu0 0.0
    %378 = vmatpush1.msra.mxu0 0.0
    %379 = vmatprep.subr.mxu0 0.0
    %380 = vmatpush1.msra.mxu0 0.0
    %381 = vmatprep.subr.mxu0 0.0
    %382 = vmatpush1.msra.mxu0 0.0
    %383 = vmatprep.subr.mxu0 0.0
    %384 = vmatpush1.msra.mxu0 0.0
    %385 = vmatprep.subr.mxu0 0.0
    %386 = vmatpush1.msra.mxu0 0.0
    %387 = vmatprep.subr.mxu0 0.0
    %388 = vmatpush1.msra.mxu0 0.0
    %389 = vmatprep.subr.mxu0 0.0
    %390 = vmatpush1.msra.mxu0 0.0
    %391 = vmatprep.subr.mxu0 0.0
    %392 = vmatpush1.msra.mxu0 0.0
    %393 = vmatprep.subr.mxu0 0.0
    %394 = vmatpush1.msra.mxu0 0.0
    %395 = vmatprep.subr.mxu0 0.0
    %396 = vmatpush1.msra.mxu0 0.0
    %397 = vmatprep.subr.mxu0 0.0
    %398 = vmatpush1.msra.mxu0 0.0
    %399 = vmatprep.subr.mxu0 0.0
    %400 = vmatpush1.msra.mxu0 0.0
    %401 = vmatprep.subr.mxu0 0.0
    %402 = vmatpush1.msra.mxu0 0.0
    %403 = vmatprep.subr.mxu0 0.0
    %404 = vmatpush1.msra.mxu0 0.0
    %405 = vmatprep.subr.mxu0 0.0
    %406 = vmatpush1.msra.mxu0 0.0
    %407 = vmatprep.subr.mxu0 0.0
    %408 = vmatpush1.msra.mxu0 0.0
    %409 = vmatprep.subr.mxu0 0.0
    %410 = vmatpush1.msra.mxu0 0.0
    %411 = vmatprep.subr.mxu0 0.0
    %412 = vmatpush1.msra.mxu0 0.0
    %413 = vmatprep.subr.mxu0 0.0
    %414 = vmatpush1.msra.mxu0 0.0
    %415 = vmatprep.subr.mxu0 0.0
    %416 = vmatpush1.msra.mxu0 0.0
    %417 = vmatprep.subr.mxu0 0.0
    %418 = vmatpush1.msra.mxu0 0.0
    %419 = vmatprep.subr.mxu0 0.0
    %420 = vmatpush1.msra.mxu0 0.0
    %421 = vmatprep.mubr.f32.mxu0 0.0
    %422 = vmatmul.mubr.f32.gmra.mrb[0].mxu0 %v355
    %v423 = vpop.f32.mrb[0].mxu0
    %v424 = vadd.f32 0.0, %v423
    %v425 = vpop.f32.mrb[0].mxu0
    %v426 = vadd.f32 0.0, %v425
    %427 = vdwg.mxu0
    %v428 = vadd.f32 %v352, %v424
    %v429 = vadd.f32 %v353, %v426
    %v430 = vxor.u32 %v428, 2147483648
    %v431 = vxor.u32 %v429, 2147483648
    %v432 = vmul.f32 %v430, 1.442695
    %v433 = vpow.pop %v432
    %v434 = vmul.f32 %v431, 1.442695
    %v435 = vpow.pop %v434
    %v436 = vadd.f32 %v433, 1.0
    %v437 = vadd.f32 %v435, 1.0
    %v438 = vrcp.pop %v436
    %v439 = vmul.f32 1.0, %v438
    %v440 = vrcp.pop %v437
    %v441 = vmul.f32 1.0, %v440
    %v442 = vtanh.pop %v429
    %444 = vrot.lane.b32.xlu0 %v351, 64
    %v445 = vpop.permute.xlu0 %444
    %v447 = vmul.f32 %v439, %v445
    %v448 = vmul.f32 %v439, %v442
    %450 = vrot.lane.b32.xlu0 %v448, 64
    %v451 = vpop.permute.xlu0 %450
    %v453 = vadd.f32 %v447, %v451
    %v454 = vtanh.pop %v453
    %v455 = vmul.f32 %v441, %v454
    %v456 = vsel %vm239, 1, 6
    %vm457 = vcmp.lt.s32.totalorder %v456, %v236
    %459 = vrot.lane.b32.xlu0 %v455, 64
    %v460 = vpop.permute.xlu0 %459
    %v462 = vsel %vm457, %v460, %v346
    %464 = vrot.lane.b32.xlu0 %v453, 64
    %v465 = vpop.permute.xlu0 %464
    %v467 = vsel %vm457, %v465, %v351
    %v468 = vld [vmem:[#allocation2 + $0x20] sm:$0xff]
    %v469 = vld [vmem:[#allocation2 + $0x28] sm:$0xff]
    %v471 = vsel %vm63, %v462, 0
    %473 = vmatprep.subr.mxu0 %v218
    %474 = vmatpush1.msra.mxu0 %v217
    %475 = vmatprep.subr.mxu0 %v220
    %476 = vmatpush1.msra.mxu0 %v219
    %477 = vmatprep.subr.mxu0 %v222
    %478 = vmatpush1.msra.mxu0 %v221
    %479 = vmatprep.subr.mxu0 %v224
    %480 = vmatpush1.msra.mxu0 %v223
    %481 = vmatprep.subr.mxu0 %v226
    %482 = vmatpush1.msra.mxu0 %v225
    %483 = vmatprep.subr.mxu0 %v228
    %484 = vmatpush1.msra.mxu0 %v227
    %485 = vmatprep.subr.mxu0 %v230
    %486 = vmatpush1.msra.mxu0 %v229
    %487 = vmatprep.subr.mxu0 %v232
    %488 = vmatpush1.msra.mxu0 %v231
    %489 = vmatprep.subr.mxu0 0.0
    %490 = vmatpush1.msra.mxu0 0.0
    %491 = vmatprep.subr.mxu0 0.0
    %492 = vmatpush1.msra.mxu0 0.0
    %493 = vmatprep.subr.mxu0 0.0
    %494 = vmatpush1.msra.mxu0 0.0
    %495 = vmatprep.subr.mxu0 0.0
    %496 = vmatpush1.msra.mxu0 0.0
    %497 = vmatprep.subr.mxu0 0.0
    %498 = vmatpush1.msra.mxu0 0.0
    %499 = vmatprep.subr.mxu0 0.0
    %500 = vmatpush1.msra.mxu0 0.0
    %501 = vmatprep.subr.mxu0 0.0
    %502 = vmatpush1.msra.mxu0 0.0
    %503 = vmatprep.subr.mxu0 0.0
    %504 = vmatpush1.msra.mxu0 0.0
    %505 = vmatprep.subr.mxu0 0.0
    %506 = vmatpush1.msra.mxu0 0.0
    %507 = vmatprep.subr.mxu0 0.0
    %508 = vmatpush1.msra.mxu0 0.0
    %509 = vmatprep.subr.mxu0 0.0
    %510 = vmatpush1.msra.mxu0 0.0
    %511 = vmatprep.subr.mxu0 0.0
    %512 = vmatpush1.msra.mxu0 0.0
    %513 = vmatprep.subr.mxu0 0.0
    %514 = vmatpush1.msra.mxu0 0.0
    %515 = vmatprep.subr.mxu0 0.0
    %516 = vmatpush1.msra.mxu0 0.0
    %517 = vmatprep.subr.mxu0 0.0
    %518 = vmatpush1.msra.mxu0 0.0
    %519 = vmatprep.subr.mxu0 0.0
    %520 = vmatpush1.msra.mxu0 0.0
    %521 = vmatprep.subr.mxu0 0.0
    %522 = vmatpush1.msra.mxu0 0.0
    %523 = vmatprep.subr.mxu0 0.0
    %524 = vmatpush1.msra.mxu0 0.0
    %525 = vmatprep.subr.mxu0 0.0
    %526 = vmatpush1.msra.mxu0 0.0
    %527 = vmatprep.subr.mxu0 0.0
    %528 = vmatpush1.msra.mxu0 0.0
    %529 = vmatprep.subr.mxu0 0.0
    %530 = vmatpush1.msra.mxu0 0.0
    %531 = vmatprep.subr.mxu0 0.0
    %532 = vmatpush1.msra.mxu0 0.0
    %533 = vmatprep.subr.mxu0 0.0
    %534 = vmatpush1.msra.mxu0 0.0
    %535 = vmatprep.subr.mxu0 0.0
    %536 = vmatpush1.msra.mxu0 0.0
    %537 = vmatprep.mubr.f32.mxu0 0.0
    %538 = vmatmul.mubr.f32.gmra.mrb[0].mxu0 %v471
    %v539 = vpop.f32.mrb[0].mxu0
    %v540 = vadd.f32 0.0, %v539
    %v541 = vpop.f32.mrb[0].mxu0
    %v542 = vadd.f32 0.0, %v541
    %543 = vdwg.mxu0
    %v544 = vadd.f32 %v468, %v540
    %v545 = vadd.f32 %v469, %v542
    %v546 = vxor.u32 %v544, 2147483648
    %v547 = vxor.u32 %v545, 2147483648
    %v548 = vmul.f32 %v546, 1.442695
    %v549 = vpow.pop %v548
    %v550 = vmul.f32 %v547, 1.442695
    %v551 = vpow.pop %v550
    %v552 = vadd.f32 %v549, 1.0
    %v553 = vadd.f32 %v551, 1.0
    %v554 = vrcp.pop %v552
    %v555 = vmul.f32 1.0, %v554
    %v556 = vrcp.pop %v553
    %v557 = vmul.f32 1.0, %v556
    %v558 = vtanh.pop %v545
    %560 = vrot.lane.b32.xlu0 %v467, 64
    %v561 = vpop.permute.xlu0 %560
    %v563 = vmul.f32 %v555, %v561
    %v564 = vmul.f32 %v555, %v558
    %566 = vrot.lane.b32.xlu0 %v564, 64
    %v567 = vpop.permute.xlu0 %566
    %v569 = vadd.f32 %v563, %v567
    %v570 = vtanh.pop %v569
    %v571 = vmul.f32 %v557, %v570
    %v572 = vsel %vm239, 2, 5
    %vm573 = vcmp.lt.s32.totalorder %v572, %v236
    %575 = vrot.lane.b32.xlu0 %v571, 64
    %v576 = vpop.permute.xlu0 %575
    %v578 = vsel %vm573, %v576, %v462
    %580 = vrot.lane.b32.xlu0 %v569, 64
    %v581 = vpop.permute.xlu0 %580
    %v583 = vsel %vm573, %v581, %v467
    %v584 = vld [vmem:[#allocation2 + $0x30] sm:$0xff]
    %v585 = vld [vmem:[#allocation2 + $0x38] sm:$0xff]
    %v587 = vsel %vm63, %v578, 0
    %589 = vmatprep.subr.mxu0 %v218
    %590 = vmatpush1.msra.mxu0 %v217
    %591 = vmatprep.subr.mxu0 %v220
    %592 = vmatpush1.msra.mxu0 %v219
    %593 = vmatprep.subr.mxu0 %v222
    %594 = vmatpush1.msra.mxu0 %v221
    %595 = vmatprep.subr.mxu0 %v224
    %596 = vmatpush1.msra.mxu0 %v223
    %597 = vmatprep.subr.mxu0 %v226
    %598 = vmatpush1.msra.mxu0 %v225
    %599 = vmatprep.subr.mxu0 %v228
    %600 = vmatpush1.msra.mxu0 %v227
    %601 = vmatprep.subr.mxu0 %v230
    %602 = vmatpush1.msra.mxu0 %v229
    %603 = vmatprep.subr.mxu0 %v232
    %604 = vmatpush1.msra.mxu0 %v231
    %605 = vmatprep.subr.mxu0 0.0
    %606 = vmatpush1.msra.mxu0 0.0
    %607 = vmatprep.subr.mxu0 0.0
    %608 = vmatpush1.msra.mxu0 0.0
    %609 = vmatprep.subr.mxu0 0.0
    %610 = vmatpush1.msra.mxu0 0.0
    %611 = vmatprep.subr.mxu0 0.0
    %612 = vmatpush1.msra.mxu0 0.0
    %613 = vmatprep.subr.mxu0 0.0
    %614 = vmatpush1.msra.mxu0 0.0
    %615 = vmatprep.subr.mxu0 0.0
    %616 = vmatpush1.msra.mxu0 0.0
    %617 = vmatprep.subr.mxu0 0.0
    %618 = vmatpush1.msra.mxu0 0.0
    %619 = vmatprep.subr.mxu0 0.0
    %620 = vmatpush1.msra.mxu0 0.0
    %621 = vmatprep.subr.mxu0 0.0
    %622 = vmatpush1.msra.mxu0 0.0
    %623 = vmatprep.subr.mxu0 0.0
    %624 = vmatpush1.msra.mxu0 0.0
    %625 = vmatprep.subr.mxu0 0.0
    %626 = vmatpush1.msra.mxu0 0.0
    %627 = vmatprep.subr.mxu0 0.0
    %628 = vmatpush1.msra.mxu0 0.0
    %629 = vmatprep.subr.mxu0 0.0
    %630 = vmatpush1.msra.mxu0 0.0
    %631 = vmatprep.subr.mxu0 0.0
    %632 = vmatpush1.msra.mxu0 0.0
    %633 = vmatprep.subr.mxu0 0.0
    %634 = vmatpush1.msra.mxu0 0.0
    %635 = vmatprep.subr.mxu0 0.0
    %636 = vmatpush1.msra.mxu0 0.0
    %637 = vmatprep.subr.mxu0 0.0
    %638 = vmatpush1.msra.mxu0 0.0
    %639 = vmatprep.subr.mxu0 0.0
    %640 = vmatpush1.msra.mxu0 0.0
    %641 = vmatprep.subr.mxu0 0.0
    %642 = vmatpush1.msra.mxu0 0.0
    %643 = vmatprep.subr.mxu0 0.0
    %644 = vmatpush1.msra.mxu0 0.0
    %645 = vmatprep.subr.mxu0 0.0
    %646 = vmatpush1.msra.mxu0 0.0
    %647 = vmatprep.subr.mxu0 0.0
    %648 = vmatpush1.msra.mxu0 0.0
    %649 = vmatprep.subr.mxu0 0.0
    %650 = vmatpush1.msra.mxu0 0.0
    %651 = vmatprep.subr.mxu0 0.0
    %652 = vmatpush1.msra.mxu0 0.0
    %653 = vmatprep.mubr.f32.mxu0 0.0
    %654 = vmatmul.mubr.f32.gmra.mrb[0].mxu0 %v587
    %v655 = vpop.f32.mrb[0].mxu0
    %v656 = vadd.f32 0.0, %v655
    %v657 = vpop.f32.mrb[0].mxu0
    %v658 = vadd.f32 0.0, %v657
    %659 = vdwg.mxu0
    %v660 = vadd.f32 %v584, %v656
    %v661 = vadd.f32 %v585, %v658
    %v662 = vxor.u32 %v660, 2147483648
    %v663 = vxor.u32 %v661, 2147483648
    %v664 = vmul.f32 %v662, 1.442695
    %v665 = vpow.pop %v664
    %v666 = vmul.f32 %v663, 1.442695
    %v667 = vpow.pop %v666
    %v668 = vadd.f32 %v665, 1.0
    %v669 = vadd.f32 %v667, 1.0
    %v670 = vrcp.pop %v668
    %v671 = vmul.f32 1.0, %v670
    %v672 = vrcp.pop %v669
    %v673 = vmul.f32 1.0, %v672
    %v674 = vtanh.pop %v661
    %676 = vrot.lane.b32.xlu0 %v583, 64
    %v677 = vpop.permute.xlu0 %676
    %v679 = vmul.f32 %v671, %v677
    %v680 = vmul.f32 %v671, %v674
    %682 = vrot.lane.b32.xlu0 %v680, 64
    %v683 = vpop.permute.xlu0 %682
    %v685 = vadd.f32 %v679, %v683
    %v686 = vtanh.pop %v685
    %v687 = vmul.f32 %v673, %v686
    %v688 = vsel %vm239, 3, 4
    %vm689 = vcmp.lt.s32.totalorder %v688, %v236
    %691 = vrot.lane.b32.xlu0 %v687, 64
    %v692 = vpop.permute.xlu0 %691
    %v694 = vsel %vm689, %v692, %v578
    %696 = vrot.lane.b32.xlu0 %v685, 64
    %v697 = vpop.permute.xlu0 %696
    %v699 = vsel %vm689, %v697, %v583
    %v700 = vld [vmem:[#allocation2 + $0x40] sm:$0xff]
    %v701 = vld [vmem:[#allocation2 + $0x48] sm:$0xff]
    %v703 = vsel %vm63, %v694, 0
    %705 = vmatprep.subr.mxu0 %v218
    %706 = vmatpush1.msra.mxu0 %v217
    %707 = vmatprep.subr.mxu0 %v220
    %708 = vmatpush1.msra.mxu0 %v219
    %709 = vmatprep.subr.mxu0 %v222
    %710 = vmatpush1.msra.mxu0 %v221
    %711 = vmatprep.subr.mxu0 %v224
    %712 = vmatpush1.msra.mxu0 %v223
    %713 = vmatprep.subr.mxu0 %v226
    %714 = vmatpush1.msra.mxu0 %v225
    %715 = vmatprep.subr.mxu0 %v228
    %716 = vmatpush1.msra.mxu0 %v227
    %717 = vmatprep.subr.mxu0 %v230
    %718 = vmatpush1.msra.mxu0 %v229
    %719 = vmatprep.subr.mxu0 %v232
    %720 = vmatpush1.msra.mxu0 %v231
    %721 = vmatprep.subr.mxu0 0.0
    %722 = vmatpush1.msra.mxu0 0.0
    %723 = vmatprep.subr.mxu0 0.0
    %724 = vmatpush1.msra.mxu0 0.0
    %725 = vmatprep.subr.mxu0 0.0
    %726 = vmatpush1.msra.mxu0 0.0
    %727 = vmatprep.subr.mxu0 0.0
    %728 = vmatpush1.msra.mxu0 0.0
    %729 = vmatprep.subr.mxu0 0.0
    %730 = vmatpush1.msra.mxu0 0.0
    %731 = vmatprep.subr.mxu0 0.0
    %732 = vmatpush1.msra.mxu0 0.0
    %733 = vmatprep.subr.mxu0 0.0
    %734 = vmatpush1.msra.mxu0 0.0
    %735 = vmatprep.subr.mxu0 0.0
    %736 = vmatpush1.msra.mxu0 0.0
    %737 = vmatprep.subr.mxu0 0.0
    %738 = vmatpush1.msra.mxu0 0.0
    %739 = vmatprep.subr.mxu0 0.0
    %740 = vmatpush1.msra.mxu0 0.0
    %741 = vmatprep.subr.mxu0 0.0
    %742 = vmatpush1.msra.mxu0 0.0
    %743 = vmatprep.subr.mxu0 0.0
    %744 = vmatpush1.msra.mxu0 0.0
    %745 = vmatprep.subr.mxu0 0.0
    %746 = vmatpush1.msra.mxu0 0.0
    %747 = vmatprep.subr.mxu0 0.0
    %748 = vmatpush1.msra.mxu0 0.0
    %749 = vmatprep.subr.mxu0 0.0
    %750 = vmatpush1.msra.mxu0 0.0
    %751 = vmatprep.subr.mxu0 0.0
    %752 = vmatpush1.msra.mxu0 0.0
    %753 = vmatprep.subr.mxu0 0.0
    %754 = vmatpush1.msra.mxu0 0.0
    %755 = vmatprep.subr.mxu0 0.0
    %756 = vmatpush1.msra.mxu0 0.0
    %757 = vmatprep.subr.mxu0 0.0
    %758 = vmatpush1.msra.mxu0 0.0
    %759 = vmatprep.subr.mxu0 0.0
    %760 = vmatpush1.msra.mxu0 0.0
    %761 = vmatprep.subr.mxu0 0.0
    %762 = vmatpush1.msra.mxu0 0.0
    %763 = vmatprep.subr.mxu0 0.0
    %764 = vmatpush1.msra.mxu0 0.0
    %765 = vmatprep.subr.mxu0 0.0
    %766 = vmatpush1.msra.mxu0 0.0
    %767 = vmatprep.subr.mxu0 0.0
    %768 = vmatpush1.msra.mxu0 0.0
    %769 = vmatprep.mubr.f32.mxu0 0.0
    %770 = vmatmul.mubr.f32.gmra.mrb[0].mxu0 %v703
    %v771 = vpop.f32.mrb[0].mxu0
    %v772 = vadd.f32 0.0, %v771
    %v773 = vpop.f32.mrb[0].mxu0
    %v774 = vadd.f32 0.0, %v773
    %775 = vdwg.mxu0
    %v776 = vadd.f32 %v700, %v772
    %v777 = vadd.f32 %v701, %v774
    %v778 = vxor.u32 %v776, 2147483648
    %v779 = vxor.u32 %v777, 2147483648
    %v780 = vmul.f32 %v778, 1.442695
    %v781 = vpow.pop %v780
    %v782 = vmul.f32 %v779, 1.442695
    %v783 = vpow.pop %v782
    %v784 = vadd.f32 %v781, 1.0
    %v785 = vadd.f32 %v783, 1.0
    %v786 = vrcp.pop %v784
    %v787 = vmul.f32 1.0, %v786
    %v788 = vrcp.pop %v785
    %v789 = vmul.f32 1.0, %v788
    %v790 = vtanh.pop %v777
    %792 = vrot.lane.b32.xlu0 %v699, 64
    %v793 = vpop.permute.xlu0 %792
    %v795 = vmul.f32 %v787, %v793
    %v796 = vmul.f32 %v787, %v790
    %798 = vrot.lane.b32.xlu0 %v796, 64
    %v799 = vpop.permute.xlu0 %798
    %v801 = vadd.f32 %v795, %v799
    %v802 = vtanh.pop %v801
    %v803 = vmul.f32 %v789, %v802
    %v804 = vsel %vm239, 4, 3
    %vm805 = vcmp.lt.s32.totalorder %v804, %v236
    %807 = vrot.lane.b32.xlu0 %v803, 64
    %v808 = vpop.permute.xlu0 %807
    %v810 = vsel %vm805, %v808, %v694
    %812 = vrot.lane.b32.xlu0 %v801, 64
    %v813 = vpop.permute.xlu0 %812
    %v815 = vsel %vm805, %v813, %v699
    %v816 = vld [vmem:[#allocation2 + $0x50] sm:$0xff]
    %v817 = vld [vmem:[#allocation2 + $0x58] sm:$0xff]
    %v819 = vsel %vm63, %v810, 0
    %821 = vmatprep.subr.mxu0 %v218
    %822 = vmatpush1.msra.mxu0 %v217
    %823 = vmatprep.subr.mxu0 %v220
    %824 = vmatpush1.msra.mxu0 %v219
    %825 = vmatprep.subr.mxu0 %v222
    %826 = vmatpush1.msra.mxu0 %v221
    %827 = vmatprep.subr.mxu0 %v224
    %828 = vmatpush1.msra.mxu0 %v223
    %829 = vmatprep.subr.mxu0 %v226
    %830 = vmatpush1.msra.mxu0 %v225
    %831 = vmatprep.subr.mxu0 %v228
    %832 = vmatpush1.msra.mxu0 %v227
    %833 = vmatprep.subr.mxu0 %v230
    %834 = vmatpush1.msra.mxu0 %v229
    %835 = vmatprep.subr.mxu0 %v232
    %836 = vmatpush1.msra.mxu0 %v231
    %837 = vmatprep.subr.mxu0 0.0
    %838 = vmatpush1.msra.mxu0 0.0
    %839 = vmatprep.subr.mxu0 0.0
    %840 = vmatpush1.msra.mxu0 0.0
    %841 = vmatprep.subr.mxu0 0.0
    %842 = vmatpush1.msra.mxu0 0.0
    %843 = vmatprep.subr.mxu0 0.0
    %844 = vmatpush1.msra.mxu0 0.0
    %845 = vmatprep.subr.mxu0 0.0
    %846 = vmatpush1.msra.mxu0 0.0
    %847 = vmatprep.subr.mxu0 0.0
    %848 = vmatpush1.msra.mxu0 0.0
    %849 = vmatprep.subr.mxu0 0.0
    %850 = vmatpush1.msra.mxu0 0.0
    %851 = vmatprep.subr.mxu0 0.0
    %852 = vmatpush1.msra.mxu0 0.0
    %853 = vmatprep.subr.mxu0 0.0
    %854 = vmatpush1.msra.mxu0 0.0
    %855 = vmatprep.subr.mxu0 0.0
    %856 = vmatpush1.msra.mxu0 0.0
    %857 = vmatprep.subr.mxu0 0.0
    %858 = vmatpush1.msra.mxu0 0.0
    %859 = vmatprep.subr.mxu0 0.0
    %860 = vmatpush1.msra.mxu0 0.0
    %861 = vmatprep.subr.mxu0 0.0
    %862 = vmatpush1.msra.mxu0 0.0
    %863 = vmatprep.subr.mxu0 0.0
    %864 = vmatpush1.msra.mxu0 0.0
    %865 = vmatprep.subr.mxu0 0.0
    %866 = vmatpush1.msra.mxu0 0.0
    %867 = vmatprep.subr.mxu0 0.0
    %868 = vmatpush1.msra.mxu0 0.0
    %869 = vmatprep.subr.mxu0 0.0
    %870 = vmatpush1.msra.mxu0 0.0
    %871 = vmatprep.subr.mxu0 0.0
    %872 = vmatpush1.msra.mxu0 0.0
    %873 = vmatprep.subr.mxu0 0.0
    %874 = vmatpush1.msra.mxu0 0.0
    %875 = vmatprep.subr.mxu0 0.0
    %876 = vmatpush1.msra.mxu0 0.0
    %877 = vmatprep.subr.mxu0 0.0
    %878 = vmatpush1.msra.mxu0 0.0
    %879 = vmatprep.subr.mxu0 0.0
    %880 = vmatpush1.msra.mxu0 0.0
    %881 = vmatprep.subr.mxu0 0.0
    %882 = vmatpush1.msra.mxu0 0.0
    %883 = vmatprep.subr.mxu0 0.0
    %884 = vmatpush1.msra.mxu0 0.0
    %885 = vmatprep.mubr.f32.mxu0 0.0
    %886 = vmatmul.mubr.f32.gmra.mrb[0].mxu0 %v819
    %v887 = vpop.f32.mrb[0].mxu0
    %v888 = vadd.f32 0.0, %v887
    %v889 = vpop.f32.mrb[0].mxu0
    %v890 = vadd.f32 0.0, %v889
    %891 = vdwg.mxu0
    %v892 = vadd.f32 %v816, %v888
    %v893 = vadd.f32 %v817, %v890
    %v894 = vxor.u32 %v892, 2147483648
    %v895 = vxor.u32 %v893, 2147483648
    %v896 = vmul.f32 %v894, 1.442695
    %v897 = vpow.pop %v896
    %v898 = vmul.f32 %v895, 1.442695
    %v899 = vpow.pop %v898
    %v900 = vadd.f32 %v897, 1.0
    %v901 = vadd.f32 %v899, 1.0
    %v902 = vrcp.pop %v900
    %v903 = vmul.f32 1.0, %v902
    %v904 = vrcp.pop %v901
    %v905 = vmul.f32 1.0, %v904
    %v906 = vtanh.pop %v893
    %908 = vrot.lane.b32.xlu0 %v815, 64
    %v909 = vpop.permute.xlu0 %908
    %v911 = vmul.f32 %v903, %v909
    %v912 = vmul.f32 %v903, %v906
    %914 = vrot.lane.b32.xlu0 %v912, 64
    %v915 = vpop.permute.xlu0 %914
    %v917 = vadd.f32 %v911, %v915
    %v918 = vtanh.pop %v917
    %v919 = vmul.f32 %v905, %v918
    %v920 = vsel %vm239, 5, 2
    %vm921 = vcmp.lt.s32.totalorder %v920, %v236
    %923 = vrot.lane.b32.xlu0 %v919, 64
    %v924 = vpop.permute.xlu0 %923
    %v926 = vsel %vm921, %v924, %v810
    %928 = vrot.lane.b32.xlu0 %v917, 64
    %v929 = vpop.permute.xlu0 %928
    %v931 = vsel %vm921, %v929, %v815
    %v932 = vld [vmem:[#allocation2 + $0x60] sm:$0xff]
    %v933 = vld [vmem:[#allocation2 + $0x68] sm:$0xff]
    %v935 = vsel %vm63, %v926, 0
    %937 = vmatprep.subr.mxu0 %v218
    %938 = vmatpush1.msra.mxu0 %v217
    %939 = vmatprep.subr.mxu0 %v220
    %940 = vmatpush1.msra.mxu0 %v219
    %941 = vmatprep.subr.mxu0 %v222
    %942 = vmatpush1.msra.mxu0 %v221
    %943 = vmatprep.subr.mxu0 %v224
    %944 = vmatpush1.msra.mxu0 %v223
    %945 = vmatprep.subr.mxu0 %v226
    %946 = vmatpush1.msra.mxu0 %v225
    %947 = vmatprep.subr.mxu0 %v228
    %948 = vmatpush1.msra.mxu0 %v227
    %949 = vmatprep.subr.mxu0 %v230
    %950 = vmatpush1.msra.mxu0 %v229
    %951 = vmatprep.subr.mxu0 %v232
    %952 = vmatpush1.msra.mxu0 %v231
    %953 = vmatprep.subr.mxu0 0.0
    %954 = vmatpush1.msra.mxu0 0.0
    %955 = vmatprep.subr.mxu0 0.0
    %956 = vmatpush1.msra.mxu0 0.0
    %957 = vmatprep.subr.mxu0 0.0
    %958 = vmatpush1.msra.mxu0 0.0
    %959 = vmatprep.subr.mxu0 0.0
    %960 = vmatpush1.msra.mxu0 0.0
    %961 = vmatprep.subr.mxu0 0.0
    %962 = vmatpush1.msra.mxu0 0.0
    %963 = vmatprep.subr.mxu0 0.0
    %964 = vmatpush1.msra.mxu0 0.0
    %965 = vmatprep.subr.mxu0 0.0
    %966 = vmatpush1.msra.mxu0 0.0
    %967 = vmatprep.subr.mxu0 0.0
    %968 = vmatpush1.msra.mxu0 0.0
    %969 = vmatprep.subr.mxu0 0.0
    %970 = vmatpush1.msra.mxu0 0.0
    %971 = vmatprep.subr.mxu0 0.0
    %972 = vmatpush1.msra.mxu0 0.0
    %973 = vmatprep.subr.mxu0 0.0
    %974 = vmatpush1.msra.mxu0 0.0
    %975 = vmatprep.subr.mxu0 0.0
    %976 = vmatpush1.msra.mxu0 0.0
    %977 = vmatprep.subr.mxu0 0.0
    %978 = vmatpush1.msra.mxu0 0.0
    %979 = vmatprep.subr.mxu0 0.0
    %980 = vmatpush1.msra.mxu0 0.0
    %981 = vmatprep.subr.mxu0 0.0
    %982 = vmatpush1.msra.mxu0 0.0
    %983 = vmatprep.subr.mxu0 0.0
    %984 = vmatpush1.msra.mxu0 0.0
    %985 = vmatprep.subr.mxu0 0.0
    %986 = vmatpush1.msra.mxu0 0.0
    %987 = vmatprep.subr.mxu0 0.0
    %988 = vmatpush1.msra.mxu0 0.0
    %989 = vmatprep.subr.mxu0 0.0
    %990 = vmatpush1.msra.mxu0 0.0
    %991 = vmatprep.subr.mxu0 0.0
    %992 = vmatpush1.msra.mxu0 0.0
    %993 = vmatprep.subr.mxu0 0.0
    %994 = vmatpush1.msra.mxu0 0.0
    %995 = vmatprep.subr.mxu0 0.0
    %996 = vmatpush1.msra.mxu0 0.0
    %997 = vmatprep.subr.mxu0 0.0
    %998 = vmatpush1.msra.mxu0 0.0
    %999 = vmatprep.subr.mxu0 0.0
    %1000 = vmatpush1.msra.mxu0 0.0
    %1001 = vmatprep.mubr.f32.mxu0 0.0
    %1002 = vmatmul.mubr.f32.gmra.mrb[0].mxu0 %v935
    %v1003 = vpop.f32.mrb[0].mxu0
    %v1004 = vadd.f32 0.0, %v1003
    %v1005 = vpop.f32.mrb[0].mxu0
    %v1006 = vadd.f32 0.0, %v1005
    %1007 = vdwg.mxu0
    %v1008 = vadd.f32 %v932, %v1004
    %v1009 = vadd.f32 %v933, %v1006
    %v1010 = vxor.u32 %v1008, 2147483648
    %v1011 = vxor.u32 %v1009, 2147483648
    %v1012 = vmul.f32 %v1010, 1.442695
    %v1013 = vpow.pop %v1012
    %v1014 = vmul.f32 %v1011, 1.442695
    %v1015 = vpow.pop %v1014
    %v1016 = vadd.f32 %v1013, 1.0
    %v1017 = vadd.f32 %v1015, 1.0
    %v1018 = vrcp.pop %v1016
    %v1019 = vmul.f32 1.0, %v1018
    %v1020 = vrcp.pop %v1017
    %v1021 = vmul.f32 1.0, %v1020
    %v1022 = vtanh.pop %v1009
    %1024 = vrot.lane.b32.xlu0 %v931, 64
    %v1025 = vpop.permute.xlu0 %1024
    %v1027 = vmul.f32 %v1019, %v1025
    %v1028 = vmul.f32 %v1019, %v1022
    %1030 = vrot.lane.b32.xlu0 %v1028, 64
    %v1031 = vpop.permute.xlu0 %1030
    %v1033 = vadd.f32 %v1027, %v1031
    %v1034 = vtanh.pop %v1033
    %v1035 = vmul.f32 %v1021, %v1034
    %v1036 = vsel %vm239, 6, 1
    %vm1037 = vcmp.lt.s32.totalorder %v1036, %v236
    %1039 = vrot.lane.b32.xlu0 %v1035, 64
    %v1040 = vpop.permute.xlu0 %1039
    %v1042 = vsel %vm1037, %v1040, %v926
    %1044 = vrot.lane.b32.xlu0 %v1033, 64
    %v1045 = vpop.permute.xlu0 %1044
    %v1047 = vsel %vm1037, %v1045, %v931
    %v1048 = vld [vmem:[#allocation2 + $0x70] sm:$0xff]
    %v1049 = vld [vmem:[#allocation2 + $0x78] sm:$0xff]
    %v1051 = vsel %vm63, %v1042, 0
    %1053 = vmatprep.subr.mxu0 %v218
    %1054 = vmatpush1.msra.mxu0 %v217
    %1055 = vmatprep.subr.mxu0 %v220
    %1056 = vmatpush1.msra.mxu0 %v219
    %1057 = vmatprep.subr.mxu0 %v222
    %1058 = vmatpush1.msra.mxu0 %v221
    %1059 = vmatprep.subr.mxu0 %v224
    %1060 = vmatpush1.msra.mxu0 %v223
    %1061 = vmatprep.subr.mxu0 %v226
    %1062 = vmatpush1.msra.mxu0 %v225
    %1063 = vmatprep.subr.mxu0 %v228
    %1064 = vmatpush1.msra.mxu0 %v227
    %1065 = vmatprep.subr.mxu0 %v230
    %1066 = vmatpush1.msra.mxu0 %v229
    %1067 = vmatprep.subr.mxu0 %v232
    %1068 = vmatpush1.msra.mxu0 %v231
    %1069 = vmatprep.subr.mxu0 0.0
    %1070 = vmatpush1.msra.mxu0 0.0
    %1071 = vmatprep.subr.mxu0 0.0
    %1072 = vmatpush1.msra.mxu0 0.0
    %1073 = vmatprep.subr.mxu0 0.0
    %1074 = vmatpush1.msra.mxu0 0.0
    %1075 = vmatprep.subr.mxu0 0.0
    %1076 = vmatpush1.msra.mxu0 0.0
    %1077 = vmatprep.subr.mxu0 0.0
    %1078 = vmatpush1.msra.mxu0 0.0
    %1079 = vmatprep.subr.mxu0 0.0
    %1080 = vmatpush1.msra.mxu0 0.0
    %1081 = vmatprep.subr.mxu0 0.0
    %1082 = vmatpush1.msra.mxu0 0.0
    %1083 = vmatprep.subr.mxu0 0.0
    %1084 = vmatpush1.msra.mxu0 0.0
    %1085 = vmatprep.subr.mxu0 0.0
    %1086 = vmatpush1.msra.mxu0 0.0
    %1087 = vmatprep.subr.mxu0 0.0
    %1088 = vmatpush1.msra.mxu0 0.0
    %1089 = vmatprep.subr.mxu0 0.0
    %1090 = vmatpush1.msra.mxu0 0.0
    %1091 = vmatprep.subr.mxu0 0.0
    %1092 = vmatpush1.msra.mxu0 0.0
    %1093 = vmatprep.subr.mxu0 0.0
    %1094 = vmatpush1.msra.mxu0 0.0
    %1095 = vmatprep.subr.mxu0 0.0
    %1096 = vmatpush1.msra.mxu0 0.0
    %1097 = vmatprep.subr.mxu0 0.0
    %1098 = vmatpush1.msra.mxu0 0.0
    %1099 = vmatprep.subr.mxu0 0.0
    %1100 = vmatpush1.msra.mxu0 0.0
    %1101 = vmatprep.subr.mxu0 0.0
    %1102 = vmatpush1.msra.mxu0 0.0
    %1103 = vmatprep.subr.mxu0 0.0
    %1104 = vmatpush1.msra.mxu0 0.0
    %1105 = vmatprep.subr.mxu0 0.0
    %1106 = vmatpush1.msra.mxu0 0.0
    %1107 = vmatprep.subr.mxu0 0.0
    %1108 = vmatpush1.msra.mxu0 0.0
    %1109 = vmatprep.subr.mxu0 0.0
    %1110 = vmatpush1.msra.mxu0 0.0
    %1111 = vmatprep.subr.mxu0 0.0
    %1112 = vmatpush1.msra.mxu0 0.0
    %1113 = vmatprep.subr.mxu0 0.0
    %1114 = vmatpush1.msra.mxu0 0.0
    %1115 = vmatprep.subr.mxu0 0.0
    %1116 = vmatpush1.msra.mxu0 0.0
    %1117 = vmatprep.mubr.f32.mxu0 0.0
    %1118 = vmatmul.mubr.f32.gmra.mrb[0].mxu0 %v1051
    %v1119 = vpop.f32.mrb[0].mxu0
    %v1120 = vadd.f32 0.0, %v1119
    %v1121 = vpop.f32.mrb[0].mxu0
    %v1122 = vadd.f32 0.0, %v1121
    %1123 = vdwg.mxu0
    %v1124 = vadd.f32 %v1048, %v1120
    %v1125 = vadd.f32 %v1049, %v1122
    %v1126 = vxor.u32 %v1124, 2147483648
    %v1127 = vxor.u32 %v1125, 2147483648
    %v1128 = vmul.f32 %v1126, 1.442695
    %v1129 = vpow.pop %v1128
    %v1130 = vmul.f32 %v1127, 1.442695
    %v1131 = vpow.pop %v1130
    %v1132 = vadd.f32 %v1129, 1.0
    %v1133 = vadd.f32 %v1131, 1.0
    %v1134 = vrcp.pop %v1132
    %v1135 = vmul.f32 1.0, %v1134
    %v1136 = vrcp.pop %v1133
    %v1137 = vmul.f32 1.0, %v1136
    %v1138 = vtanh.pop %v1125
    %1140 = vrot.lane.b32.xlu0 %v1047, 64
    %v1141 = vpop.permute.xlu0 %1140
    %v1143 = vmul.f32 %v1135, %v1141
    %v1144 = vmul.f32 %v1135, %v1138
    %1146 = vrot.lane.b32.xlu0 %v1144, 64
    %v1147 = vpop.permute.xlu0 %1146
    %v1149 = vadd.f32 %v1143, %v1147
    %v1150 = vtanh.pop %v1149
    %v1151 = vmul.f32 %v1137, %v1150
    %v1152 = vsel %vm239, 7, 0
    %vm1153 = vcmp.lt.s32.totalorder %v1152, %v236
    %1155 = vrot.lane.b32.xlu0 %v1151, 64
    %v1156 = vpop.permute.xlu0 %1155
    %v1158 = vsel %vm1153, %v1156, %v1042
    %v1159 = vld [vmem:[%s5] sm:$0xff]
    %v1160 = vld [vmem:[%s5 + $0x8] sm:$0xff]
    %v1161 = vld [vmem:[%s5 + $0x10] sm:$0xff]
    %v1162 = vld [vmem:[%s5 + $0x18] sm:$0xff]
    %v1163 = vld [vmem:[%s5 + $0x20] sm:$0xff]
    %v1164 = vld [vmem:[%s5 + $0x28] sm:$0xff]
    %v1165 = vld [vmem:[%s5 + $0x30] sm:$0xff]
    %v1166 = vld [vmem:[%s5 + $0x38] sm:$0xff]
    %v1167 = vld [vmem:[%s6] sm:$0x1]
    %v1169 = vlaneseq
    %v1170 = vshrl.u32 %v1169, 7
    %v1171 = vsub.s32 0, %v1170
    %v1172 = vrot.slane %v1167, %v1171
    %v1175 = vsel %vm63, %v1158, 0
    %1177 = vmatprep.subr.mxu0 0.0
    %1178 = vmatpush1.msra.mxu0 %v1159
    %1179 = vmatprep.subr.mxu0 0.0
    %1180 = vmatpush1.msra.mxu0 %v1160
    %1181 = vmatprep.subr.mxu0 0.0
    %1182 = vmatpush1.msra.mxu0 %v1161
    %1183 = vmatprep.subr.mxu0 0.0
    %1184 = vmatpush1.msra.mxu0 %v1162
    %1185 = vmatprep.subr.mxu0 0.0
    %1186 = vmatpush1.msra.mxu0 %v1163
    %1187 = vmatprep.subr.mxu0 0.0
    %1188 = vmatpush1.msra.mxu0 %v1164
    %1189 = vmatprep.subr.mxu0 0.0
    %1190 = vmatpush1.msra.mxu0 %v1165
    %1191 = vmatprep.subr.mxu0 0.0
    %1192 = vmatpush1.msra.mxu0 %v1166
    %1193 = vmatprep.subr.mxu0 0.0
    %1194 = vmatpush1.msra.mxu0 0.0
    %1195 = vmatprep.subr.mxu0 0.0
    %1196 = vmatpush1.msra.mxu0 0.0
    %1197 = vmatprep.subr.mxu0 0.0
    %1198 = vmatpush1.msra.mxu0 0.0
    %1199 = vmatprep.subr.mxu0 0.0
    %1200 = vmatpush1.msra.mxu0 0.0
    %1201 = vmatprep.subr.mxu0 0.0
    %1202 = vmatpush1.msra.mxu0 0.0
    %1203 = vmatprep.subr.mxu0 0.0
    %1204 = vmatpush1.msra.mxu0 0.0
    %1205 = vmatprep.subr.mxu0 0.0
    %1206 = vmatpush1.msra.mxu0 0.0
    %1207 = vmatprep.subr.mxu0 0.0
    %1208 = vmatpush1.msra.mxu0 0.0
    %1209 = vmatprep.subr.mxu0 0.0
    %1210 = vmatpush1.msra.mxu0 0.0
    %1211 = vmatprep.subr.mxu0 0.0
    %1212 = vmatpush1.msra.mxu0 0.0
    %1213 = vmatprep.subr.mxu0 0.0
    %1214 = vmatpush1.msra.mxu0 0.0
    %1215 = vmatprep.subr.mxu0 0.0
    %1216 = vmatpush1.msra.mxu0 0.0
    %1217 = vmatprep.subr.mxu0 0.0
    %1218 = vmatpush1.msra.mxu0 0.0
    %1219 = vmatprep.subr.mxu0 0.0
    %1220 = vmatpush1.msra.mxu0 0.0
    %1221 = vmatprep.subr.mxu0 0.0
    %1222 = vmatpush1.msra.mxu0 0.0
    %1223 = vmatprep.subr.mxu0 0.0
    %1224 = vmatpush1.msra.mxu0 0.0
    %1225 = vmatprep.subr.mxu0 0.0
    %1226 = vmatpush1.msra.mxu0 0.0
    %1227 = vmatprep.subr.mxu0 0.0
    %1228 = vmatpush1.msra.mxu0 0.0
    %1229 = vmatprep.subr.mxu0 0.0
    %1230 = vmatpush1.msra.mxu0 0.0
    %1231 = vmatprep.subr.mxu0 0.0
    %1232 = vmatpush1.msra.mxu0 0.0
    %1233 = vmatprep.subr.mxu0 0.0
    %1234 = vmatpush1.msra.mxu0 0.0
    %1235 = vmatprep.subr.mxu0 0.0
    %1236 = vmatpush1.msra.mxu0 0.0
    %1237 = vmatprep.subr.mxu0 0.0
    %1238 = vmatpush1.msra.mxu0 0.0
    %1239 = vmatprep.subr.mxu0 0.0
    %1240 = vmatpush1.msra.mxu0 0.0
    %1241 = vmatprep.mubr.f32.mxu0 0.0
    %1242 = vmatmul.mubr.f32.gmra.mrb[0].mxu0 %v1175
    %v1243 = vpop.f32.mrb[0].mxu0
    %v1244 = vadd.f32 %v1172, %v1243
    %v1245 = vpop.f32.mrb[0].mxu0
    %1246 = vdwg.mxu0
    %1247 = vst [vmem:[#allocation3] sm:$0xff] %v1244
    // Predicated region
    $region30: #{bilstm_forward.1} parent=1 // pred_check
      _
    $region31: #{bilstm_forward.1} parent=1 // pred_check_branch
      %1249 = sbr.rel (0) target = $region33
    $region32: #{bilstm_forward.1} parent=1 // pred_region
      %s1251 = ssub.s32 128, 128
      %1252 = vsyncadd [#allocation4], %s1251
      %s1254 = sshll.u32 [#allocation3], 4
      %s1255 = int_to_ptr.vmem [resolvable:$true] %s1254
      %1257 = dma.vmem_to_hbm [thread:$0]  %s1255, 128, %s7, [#allocation4]
    $region33: #{bilstm_forward.1} parent=1 // pred_fallthru
      _
    // Predicated region
    $region34: #{bilstm_forward.1} parent=1 // pred_check
      _
    $region35: #{bilstm_forward.1} parent=1 // pred_check_branch
      %1259 = sbr.rel (0) target = $region37
    $region36: #{bilstm_forward.1} parent=1 // pred_region
      %1260 = dma.done [#allocation4], 128
    $region37: #{bilstm_forward.1} parent=1 // pred_fallthru
      _
    %1261 = vsyncpa [#allocation4], 1

</llo_original>
